<compile_context>
chip_gen: v5e
topology: v5e:2x2
jax: 0.10.0
libtpu: 0.0.40
codegen_flags: <defaults>
</compile_context>

<pallas_src>
import functools

import jax
import jax.numpy as jnp
from jax.experimental import pallas as pl
from jax.experimental.pallas import tpu as pltpu


# --------------------------------------------------------------------------- #
# Kernel: one grid step == one RZTXEncoderLayer application (inference mode).
# --------------------------------------------------------------------------- #
def _rztx_stack_kernel(x_ref, bias_ref,
                       ln_g_ref, ln_b_ref,
                       wqkv_ref, bqkv_ref,
                       wo_ref, bo_ref,
                       w1_ref, b1_ref,
                       w2_ref, b2_ref,
                       rw_ref,
                       out_ref,
                       *, B, S, H, Lg, resident):
    t = pl.program_id(1)                       # layer-application index
    D = out_ref.shape[1]
    dh = D // H
    scale = 1.0 / (dh ** 0.5)
    bf16 = jnp.bfloat16

    # Layer index into the (possibly resident) weight stack.
    lidx = (t % Lg) if resident else 0

    # Initialise the carried activation (the VMEM-resident output block).
    @pl.when(t == 0)
    def _init():
        out_ref[...] = x_ref[...]

    src = out_ref[...]                                         # (B*S, D) f32

    # ---- pre_norm = LayerNorm over D (f32) -------------------------------- #
    mu = jnp.mean(src, axis=-1, keepdims=True)
    diff = src - mu
    var = jnp.mean(diff * diff, axis=-1, keepdims=True)
    srcn = diff * jax.lax.rsqrt(var + 1e-5) * ln_g_ref[lidx] + ln_b_ref[lidx]

    # ---- fused QKV projection: bf16 operands, f32 accumulation ------------ #
    qkv = jnp.dot(srcn.astype(bf16), wqkv_ref[lidx],
                  preferred_element_type=jnp.float32) + bqkv_ref[lidx]

    q = qkv[:, :D].reshape(B, S, D).astype(bf16)
    k = qkv[:, D:2 * D].reshape(B, S, D).astype(bf16)
    v = qkv[:, 2 * D:].reshape(B, S, D).astype(bf16)
    bias = bias_ref[...]                                       # (B, 1, S)

    # ---- multi-head self-attention: per head, batched over B on the MXU --- #
    # TODO(synk): dropout on attention weights / residuals is identity (eval).
    head_out = []
    for h in range(H):
        sl = slice(h * dh, (h + 1) * dh)
        qh, kh, vh = q[:, :, sl], k[:, :, sl], v[:, :, sl]     # (B, S, dh) bf16
        s_ = jax.lax.dot_general(qh, kh, (((2,), (2,)), ((0,), (0,))),
                                 preferred_element_type=jnp.float32) * scale
        s_ = s_ + bias                                         # additive pad mask
        m = jnp.max(s_, axis=-1, keepdims=True)
        p = jnp.exp(s_ - m)
        a = p * pl.reciprocal(jnp.sum(p, axis=-1, keepdims=True))
        head_out.append(jax.lax.dot_general(a.astype(bf16), vh,
                                            (((2,), (1,)), ((0,), (0,))),
                                            preferred_element_type=jnp.float32))
    # Assemble heads along lanes in registers (no ctx scratch / partial stores).
    ctx = jnp.concatenate(head_out, axis=-1).reshape(B * S, D)

    proj = jnp.dot(ctx.astype(bf16), wo_ref[lidx],
                   preferred_element_type=jnp.float32) + bo_ref[lidx]

    rw = rw_ref[lidx]                                          # (1, 1) resweight
    # ReZero residual #1: connects to the *normalised* src (matches the module).
    src_a = srcn + rw * proj

    # ---- feed-forward (non-factored path), relu --------------------------- #
    h1 = jnp.dot(src_a.astype(bf16), w1_ref[lidx],
                 preferred_element_type=jnp.float32) + b1_ref[lidx]
    h1 = jnp.maximum(h1, 0.0)
    ff = jnp.dot(h1.astype(bf16), w2_ref[lidx],
                 preferred_element_type=jnp.float32) + b2_ref[lidx]

    out_ref[...] = src_a + rw * ff                             # ReZero residual #2


# --------------------------------------------------------------------------- #
# Wrapper
# --------------------------------------------------------------------------- #
def transformer_encoder_pallas(src_emb, pad_mask, params, *, num_groups, nhead,
                               batch_blocks=None):
    """src_emb: (S, B, D) seq-first; pad_mask: (B, S) {0,1}.  Returns (S, B, D)."""
    S, B, D = src_emb.shape
    Lg = params["wqkv_t"].shape[0]                 # layers_in_group
    F = params["w1_t"].shape[2]
    T = num_groups * Lg                            # total layer applications
    f32, bf16 = jnp.float32, jnp.bfloat16

    # "parallel" batch-block axis (v7x megacore: each TC runs half the batch).
    if batch_blocks is None:
        batch_blocks = 2
    while batch_blocks > 1 and not (
            B % batch_blocks == 0 and ((B // batch_blocks) * S) % 8 == 0):
        batch_blocks -= 1
    Bb = B // batch_blocks

    # One cheap layout change amortised over the whole stack: lane-dense (B*S, D).
    x2 = jnp.transpose(src_emb, (1, 0, 2)).reshape(B * S, D).astype(f32)
    # Additive key-padding bias, precomputed once (finite -> no NaN path).
    bias = jnp.where(pad_mask[:, None, :] != 0, -1e30, 0.0).astype(f32)   # (B,1,S)

    ln_g = params["ln_g"].astype(f32); ln_b = params["ln_b"].astype(f32)
    bqkv = params["bqkv"].astype(f32); bo = params["bo"].astype(f32)
    b1 = params["b1"].astype(f32); b2 = params["b2"].astype(f32)
    rw = params["rw"].astype(f32)
    wqkv = params["wqkv_t"].astype(bf16); wo = params["wo_t"].astype(bf16)
    w1 = params["w1_t"].astype(bf16); w2 = params["w2_t"].astype(bf16)

    # Keep the whole per-group weight stack VMEM-resident when small enough
    # (saves (num_groups-1)x weight HBM traffic); otherwise stream per layer.
    big_bytes = 2 * (wqkv.size + wo.size + w1.size + w2.size)            # bf16
    small_bytes = 4 * (ln_g.size + ln_b.size + bqkv.size + bo.size
                       + b1.size + b2.size + rw.size)                    # f32
    resident = 2 * (big_bytes + small_bytes) <= (24 << 20)               # x2: dbl-buf

    if resident:
        wmap = lambda bb, t: (0, 0, 0)
        lead = Lg
    else:
        wmap = lambda bb, t: (t % Lg, 0, 0)
        lead = 1

    # Explicit VMEM budget: activations + (double-buffered) weights + headroom.
    act_bytes = Bb * S * max(3 * D, F) * 4
    w_vmem = 2 * ((big_bytes + small_bytes) if resident
                  else (big_bytes + small_bytes) // Lg)
    vmem_limit = int(min(max(16 * act_bytes + w_vmem + (8 << 20), 32 << 20),
                         64 << 20))

    kernel = functools.partial(_rztx_stack_kernel, B=Bb, S=S, H=nhead, Lg=Lg,
                               resident=resident)

    out = pl.pallas_call(
        kernel,
        out_shape=jax.ShapeDtypeStruct((B * S, D), f32),
        grid=(batch_blocks, T),
        in_specs=[
            pl.BlockSpec((Bb * S, D), lambda bb, t: (bb, 0)),   # activation (t==0)
            pl.BlockSpec((Bb, 1, S), lambda bb, t: (bb, 0, 0)), # additive pad bias
            pl.BlockSpec((lead, 1, D), wmap),                   # LN gamma
            pl.BlockSpec((lead, 1, D), wmap),                   # LN beta
            pl.BlockSpec((lead, D, 3 * D), wmap),               # Wqkv^T (bf16)
            pl.BlockSpec((lead, 1, 3 * D), wmap),               # bqkv
            pl.BlockSpec((lead, D, D), wmap),                   # Wo^T   (bf16)
            pl.BlockSpec((lead, 1, D), wmap),                   # bo
            pl.BlockSpec((lead, D, F), wmap),                   # W1^T   (bf16)
            pl.BlockSpec((lead, 1, F), wmap),                   # b1
            pl.BlockSpec((lead, F, D), wmap),                   # W2^T   (bf16)
            pl.BlockSpec((lead, 1, D), wmap),                   # b2
            pl.BlockSpec((lead, 1, 1), wmap),                   # resweight
        ],
        out_specs=pl.BlockSpec((Bb * S, D), lambda bb, t: (bb, 0)),
        input_output_aliases={0: 0},           # activation never re-fetched
        compiler_params=pltpu.CompilerParams(
            dimension_semantics=("parallel", "arbitrary"),
            vmem_limit_bytes=vmem_limit),
    )(x2, bias, ln_g, ln_b, wqkv, bqkv, wo, bo, w1, b1, w2, b2, rw)

    return jnp.transpose(out.reshape(B, S, D), (1, 0, 2))


# --------------------------------------------------------------------------- #
# Pure-JAX reference mirroring the PyTorch forward (eval mode), same mixed
# precision as the kernel (bf16 matmul operands, f32 accumulation / vector math).
# --------------------------------------------------------------------------- #
def transformer_encoder_reference(src_emb, pad_mask, params, *, num_groups, nhead):
    f32, bf16 = jnp.float32, jnp.bfloat16
    x = src_emb.astype(f32)                                    # (S, B, D)
    S, B, D = x.shape
    Lg = params["wqkv_t"].shape[0]
    dh = D // nhead
    scale = 1.0 / (dh ** 0.5)
    bias = jnp.where(pad_mask[:, None, None, :] != 0, -1e30, 0.0).astype(f32)

    def mm(a, w):      # bf16 x bf16 -> f32 accumulation (matches the MXU calls)
        return jax.lax.dot_general(a.astype(bf16), w.astype(bf16),
                                   (((a.ndim - 1,), (0,)), ((), ())),
                                   preferred_element_type=f32)

    for _ in range(num_groups):
        for l in range(Lg):
            mu = jnp.mean(x, -1, keepdims=True)
            var = jnp.mean((x - mu) ** 2, -1, keepdims=True)
            xn = (x - mu) * jax.lax.rsqrt(var + 1e-5) * params["ln_g"][l, 0] \
                 + params["ln_b"][l, 0]
            qkv = mm(xn, params["wqkv_t"][l]) + params["bqkv"][l, 0]    # (S,B,3D)
            q = qkv[..., :D].reshape(S, B, nhead, dh).astype(bf16)
            k = qkv[..., D:2 * D].reshape(S, B, nhead, dh).astype(bf16)
            v = qkv[..., 2 * D:].reshape(S, B, nhead, dh).astype(bf16)
            s = jnp.einsum("sbhd,tbhd->bhst", q, k,
                           preferred_element_type=f32) * scale
            s = s + bias
            p = jax.nn.softmax(s, axis=-1)
            ctx = jnp.einsum("bhst,tbhd->sbhd", p.astype(bf16), v,
                             preferred_element_type=f32).reshape(S, B, D)
            xn = xn + params["rw"][l, 0, 0] * (mm(ctx, params["wo_t"][l])
                                               + params["bo"][l, 0])
            h1 = jax.nn.relu(mm(xn, params["w1_t"][l]) + params["b1"][l, 0])
            ff = mm(h1, params["w2_t"][l]) + params["b2"][l, 0]
            x = xn + params["rw"][l, 0, 0] * ff
    # TODO(synk): optional final `norm` is None in the module defaults; not applied.
    return x


if __name__ == "__main__":
    # emb_dim=32, n_head=4, n_hid=64, num_layers=4, num_groups=2 (2 layers reused 2x)
    S, B, D, H, F = 8, 2, 32, 4, 64
    num_layers, num_groups = 4, 2
    Lg = num_layers // num_groups

    key = jax.random.PRNGKey(0)
    keys = jax.random.split(key, 13)

    def rnd(k, shape, scale=0.1):
        return jax.random.normal(k, shape, jnp.float32) * scale

    # NOTE: PyTorch initialises resweight to 0 (layer == LayerNorm only); nonzero
    # values are used here so the attention/FFN paths are exercised by the check.
    params = dict(
        ln_g=1.0 + rnd(keys[0], (Lg, 1, D), 0.05),
        ln_b=rnd(keys[1], (Lg, 1, D), 0.05),
        wqkv_t=rnd(keys[2], (Lg, D, 3 * D)),        # in_proj_weight^T, per layer
        bqkv=rnd(keys[3], (Lg, 1, 3 * D), 0.02),
        wo_t=rnd(keys[4], (Lg, D, D)),              # out_proj.weight^T
        bo=rnd(keys[5], (Lg, 1, D), 0.02),
        w1_t=rnd(keys[6], (Lg, D, F)),              # linear1.weight^T
        b1=rnd(keys[7], (Lg, 1, F), 0.02),
        w2_t=rnd(keys[8], (Lg, F, D)),              # linear2.weight^T
        b2=rnd(keys[9], (Lg, 1, D), 0.02),
        rw=0.5 + rnd(keys[10], (Lg, 1, 1), 0.1),
    )

    src_emb = jax.random.normal(keys[11], (S, B, D), jnp.float32)   # (S, B, D)
    pad_mask = jnp.zeros((B, S), jnp.int32).at[1, S - 2:].set(1)    # (B, S)

    out = transformer_encoder_pallas(src_emb, pad_mask, params,
                                     num_groups=num_groups, nhead=H)
    out = jax.block_until_ready(out)

    ref = transformer_encoder_reference(src_emb, pad_mask, params,
                                        num_groups=num_groups, nhead=H)
    assert out.shape == (S, B, D), out.shape
    max_err = float(jnp.max(jnp.abs(out - ref)))
    assert jnp.allclose(out, ref, atol=2e-3, rtol=2e-3), f"mismatch: {max_err}"

    print("KERNEL_OK")
</pallas_src>

<mosaic_0001>
module attributes {stable_mosaic.version = 11 : i64} {
  func.func @_rztx_stack_kernel(%arg0: i32, %arg1: i32, %arg2: memref<8x32xf32, #tpu.memory_space<vmem>>, %arg3: memref<1x1x8xf32, #tpu.memory_space<vmem>>, %arg4: memref<2x1x32xf32, #tpu.memory_space<vmem>>, %arg5: memref<2x1x32xf32, #tpu.memory_space<vmem>>, %arg6: memref<2x32x96xbf16, #tpu.memory_space<vmem>>, %arg7: memref<2x1x96xf32, #tpu.memory_space<vmem>>, %arg8: memref<2x32x32xbf16, #tpu.memory_space<vmem>>, %arg9: memref<2x1x32xf32, #tpu.memory_space<vmem>>, %arg10: memref<2x32x64xbf16, #tpu.memory_space<vmem>>, %arg11: memref<2x1x64xf32, #tpu.memory_space<vmem>>, %arg12: memref<2x64x32xbf16, #tpu.memory_space<vmem>>, %arg13: memref<2x1x32xf32, #tpu.memory_space<vmem>>, %arg14: memref<2x1x1xf32, #tpu.memory_space<vmem>>, %arg15: memref<8x32xf32, #tpu.memory_space<vmem>>) attributes {dimension_semantics = [#tpu.dimension_semantics<parallel>, #tpu.dimension_semantics<arbitrary>], iteration_bounds = array<i64: 2, 4>, scalar_prefetch = 0 : i64, scratch_operands = 0 : i64, tpu.core_type = #tpu.core_type<tc>, window_params = [{transform_indices = @transform_0, window_bounds = array<i64: 8, 32>}, {transform_indices = @transform_1, window_bounds = array<i64: 1, 1, 8>}, {pipeline_mode = #tpu.pipeline_mode<synchronous>, transform_indices = @transform_2, window_bounds = array<i64: 2, 1, 32>}, {pipeline_mode = #tpu.pipeline_mode<synchronous>, transform_indices = @transform_3, window_bounds = array<i64: 2, 1, 32>}, {pipeline_mode = #tpu.pipeline_mode<synchronous>, transform_indices = @transform_4, window_bounds = array<i64: 2, 32, 96>}, {pipeline_mode = #tpu.pipeline_mode<synchronous>, transform_indices = @transform_5, window_bounds = array<i64: 2, 1, 96>}, {pipeline_mode = #tpu.pipeline_mode<synchronous>, transform_indices = @transform_6, window_bounds = array<i64: 2, 32, 32>}, {pipeline_mode = #tpu.pipeline_mode<synchronous>, transform_indices = @transform_7, window_bounds = array<i64: 2, 1, 32>}, {pipeline_mode = #tpu.pipeline_mode<synchronous>, transform_indices = @transform_8, window_bounds = array<i64: 2, 32, 64>}, {pipeline_mode = #tpu.pipeline_mode<synchronous>, transform_indices = @transform_9, window_bounds = array<i64: 2, 1, 64>}, {pipeline_mode = #tpu.pipeline_mode<synchronous>, transform_indices = @transform_10, window_bounds = array<i64: 2, 64, 32>}, {pipeline_mode = #tpu.pipeline_mode<synchronous>, transform_indices = @transform_11, window_bounds = array<i64: 2, 1, 32>}, {pipeline_mode = #tpu.pipeline_mode<synchronous>, transform_indices = @transform_12, window_bounds = array<i64: 2, 1, 1>}, {transform_indices = @transform_13, window_bounds = array<i64: 8, 32>}]} {
    %c2_i32 = arith.constant 2 : i32
    %c0_i32 = arith.constant 0 : i32
    %0 = arith.cmpi eq, %c2_i32, %c0_i32 : i32
    %c1_i32 = arith.constant 1 : i32
    %1 = arith.select %0, %c1_i32, %c2_i32 : i32
    %2 = arith.remsi %arg1, %1 : i32
    %c0_i32_0 = arith.constant 0 : i32
    %3 = arith.cmpi ne, %2, %c0_i32_0 : i32
    %c0_i32_1 = arith.constant 0 : i32
    %4 = arith.cmpi slt, %2, %c0_i32_1 : i32
    %c0_i32_2 = arith.constant 0 : i32
    %5 = arith.cmpi slt, %1, %c0_i32_2 : i32
    %6 = arith.xori %4, %5 : i1
    %7 = arith.andi %6, %3 : i1
    %8 = arith.addi %2, %1 : i32
    %9 = arith.select %7, %8, %2 : i32
    %c0_i32_3 = arith.constant 0 : i32
    %10 = arith.cmpi eq, %arg1, %c0_i32_3 : i32
    %11 = arith.extui %10 : i1 to i32
    %c0_i32_4 = arith.constant 0 : i32
    %12 = arith.cmpi ne, %11, %c0_i32_4 : i32
    scf.if %12 {
      %c0_62 = arith.constant 0 : index
      %c0_63 = arith.constant 0 : index
      %184 = vector.load %arg2[%c0_62, %c0_63] : memref<8x32xf32, #tpu.memory_space<vmem>>, vector<8x32xf32>
      %c0_64 = arith.constant 0 : index
      %c0_65 = arith.constant 0 : index
      %185 = vector.load %arg15[%c0_64, %c0_65] : memref<8x32xf32, #tpu.memory_space<vmem>>, vector<8x32xf32>
      tpu.vector_store %arg15[%c0_64, %c0_65], %184 {strides = array<i32>} : memref<8x32xf32, #tpu.memory_space<vmem>>, vector<8x32xf32>,
    } else {
    }
    %c0 = arith.constant 0 : index
    %c0_5 = arith.constant 0 : index
    %13 = vector.load %arg15[%c0, %c0_5] : memref<8x32xf32, #tpu.memory_space<vmem>>, vector<8x32xf32>
    %cst = arith.constant dense<0.000000e+00> : vector<8xf32>
    %14 = vector.multi_reduction <add>, %13, %cst [1] : vector<8x32xf32> to vector<8xf32>
    %15 = vector.shape_cast %14 : vector<8xf32> to vector<8x1xf32>
    %cst_6 = arith.constant 3.200000e+01 : f32
    %16 = vector.broadcast %cst_6 : f32 to vector<8x1xf32>
    %17 = arith.divf %15, %16 : vector<8x1xf32>
    %18 = vector.broadcast %17 : vector<8x1xf32> to vector<8x32xf32>
    %19 = arith.subf %13, %18 : vector<8x32xf32>
    %20 = arith.mulf %19, %19 : vector<8x32xf32>
    %cst_7 = arith.constant dense<0.000000e+00> : vector<8xf32>
    %21 = vector.multi_reduction <add>, %20, %cst_7 [1] : vector<8x32xf32> to vector<8xf32>
    %22 = vector.shape_cast %21 : vector<8xf32> to vector<8x1xf32>
    %cst_8 = arith.constant 3.200000e+01 : f32
    %23 = vector.broadcast %cst_8 : f32 to vector<8x1xf32>
    %24 = arith.divf %22, %23 : vector<8x1xf32>
    %cst_9 = arith.constant 9.99999974E-6 : f32
    %25 = vector.broadcast %cst_9 : f32 to vector<8x1xf32>
    %26 = arith.addf %24, %25 : vector<8x1xf32>
    %27 = math.rsqrt %26 : vector<8x1xf32>
    %28 = vector.broadcast %27 : vector<8x1xf32> to vector<8x32xf32>
    %29 = arith.mulf %19, %28 : vector<8x32xf32>
    %30 = arith.index_cast %9 : i32 to index
    %c0_10 = arith.constant 0 : index
    %c0_11 = arith.constant 0 : index
    %31 = vector.load %arg4[%30, %c0_10, %c0_11] : memref<2x1x32xf32, #tpu.memory_space<vmem>>, vector<1x1x32xf32>
    %32 = vector.shape_cast %31 : vector<1x1x32xf32> to vector<1x32xf32>
    %33 = vector.broadcast %32 : vector<1x32xf32> to vector<8x32xf32>
    %34 = arith.mulf %29, %33 : vector<8x32xf32>
    %35 = arith.index_cast %9 : i32 to index
    %c0_12 = arith.constant 0 : index
    %c0_13 = arith.constant 0 : index
    %36 = vector.load %arg5[%35, %c0_12, %c0_13] : memref<2x1x32xf32, #tpu.memory_space<vmem>>, vector<1x1x32xf32>
    %37 = vector.shape_cast %36 : vector<1x1x32xf32> to vector<1x32xf32>
    %38 = vector.broadcast %37 : vector<1x32xf32> to vector<8x32xf32>
    %39 = arith.addf %34, %38 : vector<8x32xf32>
    %40 = arith.truncf %39 : vector<8x32xf32> to vector<8x32xbf16>
    %41 = arith.index_cast %9 : i32 to index
    %c0_14 = arith.constant 0 : index
    %c0_15 = arith.constant 0 : index
    %42 = vector.load %arg6[%41, %c0_14, %c0_15] : memref<2x32x96xbf16, #tpu.memory_space<vmem>>, vector<1x32x96xbf16>
    %43 = vector.shape_cast %42 : vector<1x32x96xbf16> to vector<32x96xbf16>
    %cst_16 = arith.constant dense<0.000000e+00> : vector<8x96xf32>
    %44 = tpu.matmul %40, %43, %cst_16 {dimension_numbers = #tpu.dot_dimension_numbers<[1], [0], [0], [1], [0, 0, 1, 1], [], []>} : vector<8x32xbf16>, vector<32x96xbf16>, vector<8x96xf32> -> vector<8x96xf32>
    %45 = arith.index_cast %9 : i32 to index
    %c0_17 = arith.constant 0 : index
    %c0_18 = arith.constant 0 : index
    %46 = vector.load %arg7[%45, %c0_17, %c0_18] : memref<2x1x96xf32, #tpu.memory_space<vmem>>, vector<1x1x96xf32>
    %47 = vector.shape_cast %46 : vector<1x1x96xf32> to vector<1x96xf32>
    %48 = vector.broadcast %47 : vector<1x96xf32> to vector<8x96xf32>
    %49 = arith.addf %44, %48 : vector<8x96xf32>
    %50 = vector.extract_strided_slice %49 {offsets = [0, 0], sizes = [8, 32], strides = [1, 1]} : vector<8x96xf32> to vector<8x32xf32>
    %51 = vector.shape_cast %50 : vector<8x32xf32> to vector<1x8x32xf32>
    %52 = arith.truncf %51 : vector<1x8x32xf32> to vector<1x8x32xbf16>
    %53 = vector.extract_strided_slice %49 {offsets = [0, 32], sizes = [8, 32], strides = [1, 1]} : vector<8x96xf32> to vector<8x32xf32>
    %54 = vector.shape_cast %53 : vector<8x32xf32> to vector<1x8x32xf32>
    %55 = arith.truncf %54 : vector<1x8x32xf32> to vector<1x8x32xbf16>
    %56 = vector.extract_strided_slice %49 {offsets = [0, 64], sizes = [8, 32], strides = [1, 1]} : vector<8x96xf32> to vector<8x32xf32>
    %57 = vector.shape_cast %56 : vector<8x32xf32> to vector<1x8x32xf32>
    %58 = arith.truncf %57 : vector<1x8x32xf32> to vector<1x8x32xbf16>
    %c0_19 = arith.constant 0 : index
    %c0_20 = arith.constant 0 : index
    %c0_21 = arith.constant 0 : index
    %59 = vector.load %arg3[%c0_19, %c0_20, %c0_21] : memref<1x1x8xf32, #tpu.memory_space<vmem>>, vector<1x1x8xf32>
    %60 = vector.extract_strided_slice %52 {offsets = [0, 0, 0], sizes = [1, 8, 8], strides = [1, 1, 1]} : vector<1x8x32xbf16> to vector<1x8x8xbf16>
    %61 = vector.extract_strided_slice %55 {offsets = [0, 0, 0], sizes = [1, 8, 8], strides = [1, 1, 1]} : vector<1x8x32xbf16> to vector<1x8x8xbf16>
    %62 = vector.extract_strided_slice %58 {offsets = [0, 0, 0], sizes = [1, 8, 8], strides = [1, 1, 1]} : vector<1x8x32xbf16> to vector<1x8x8xbf16>
    %cst_22 = arith.constant dense<0.000000e+00> : vector<1x8x8xf32>
    %63 = tpu.matmul %60, %61, %cst_22 {dimension_numbers = #tpu.dot_dimension_numbers<[2], [2], [1], [1], [0, 0, 0, 1, 1, 1], [0], [0]>} : vector<1x8x8xbf16>, vector<1x8x8xbf16>, vector<1x8x8xf32> -> vector<1x8x8xf32>
    %cst_23 = arith.constant 0.353553385 : f32
    %64 = vector.broadcast %cst_23 : f32 to vector<1x8x8xf32>
    %65 = arith.mulf %63, %64 : vector<1x8x8xf32>
    %66 = vector.broadcast %59 : vector<1x1x8xf32> to vector<1x8x8xf32>
    %67 = arith.addf %65, %66 : vector<1x8x8xf32>
    %cst_24 = arith.constant dense<0xFF800000> : vector<1x8xf32>
    %68 = vector.multi_reduction <maximumf>, %67, %cst_24 [2] : vector<1x8x8xf32> to vector<1x8xf32>
    %69 = vector.shape_cast %68 : vector<1x8xf32> to vector<1x8x1xf32>
    %70 = vector.broadcast %69 : vector<1x8x1xf32> to vector<1x8x8xf32>
    %71 = arith.subf %67, %70 : vector<1x8x8xf32>
    %72 = math.exp %71 : vector<1x8x8xf32>
    %cst_25 = arith.constant dense<0.000000e+00> : vector<1x8xf32>
    %73 = vector.multi_reduction <add>, %72, %cst_25 [2] : vector<1x8x8xf32> to vector<1x8xf32>
    %74 = vector.shape_cast %73 : vector<1x8xf32> to vector<1x8x1xf32>
    %75 = tpu.reciprocal %74 : vector<1x8x1xf32> -> vector<1x8x1xf32>
    %76 = vector.broadcast %75 : vector<1x8x1xf32> to vector<1x8x8xf32>
    %77 = arith.mulf %72, %76 : vector<1x8x8xf32>
    %78 = arith.truncf %77 : vector<1x8x8xf32> to vector<1x8x8xbf16>
    %cst_26 = arith.constant dense<0.000000e+00> : vector<1x8x8xf32>
    %79 = tpu.matmul %78, %62, %cst_26 {dimension_numbers = #tpu.dot_dimension_numbers<[2], [1], [1], [2], [0, 0, 0, 1, 1, 2], [0], [0]>} : vector<1x8x8xbf16>, vector<1x8x8xbf16>, vector<1x8x8xf32> -> vector<1x8x8xf32>
    %80 = vector.extract_strided_slice %52 {offsets = [0, 0, 8], sizes = [1, 8, 8], strides = [1, 1, 1]} : vector<1x8x32xbf16> to vector<1x8x8xbf16>
    %81 = vector.extract_strided_slice %55 {offsets = [0, 0, 8], sizes = [1, 8, 8], strides = [1, 1, 1]} : vector<1x8x32xbf16> to vector<1x8x8xbf16>
    %82 = vector.extract_strided_slice %58 {offsets = [0, 0, 8], sizes = [1, 8, 8], strides = [1, 1, 1]} : vector<1x8x32xbf16> to vector<1x8x8xbf16>
    %cst_27 = arith.constant dense<0.000000e+00> : vector<1x8x8xf32>
    %83 = tpu.matmul %80, %81, %cst_27 {dimension_numbers = #tpu.dot_dimension_numbers<[2], [2], [1], [1], [0, 0, 0, 1, 1, 1], [0], [0]>} : vector<1x8x8xbf16>, vector<1x8x8xbf16>, vector<1x8x8xf32> -> vector<1x8x8xf32>
    %cst_28 = arith.constant 0.353553385 : f32
    %84 = vector.broadcast %cst_28 : f32 to vector<1x8x8xf32>
    %85 = arith.mulf %83, %84 : vector<1x8x8xf32>
    %86 = vector.broadcast %59 : vector<1x1x8xf32> to vector<1x8x8xf32>
    %87 = arith.addf %85, %86 : vector<1x8x8xf32>
    %cst_29 = arith.constant dense<0xFF800000> : vector<1x8xf32>
    %88 = vector.multi_reduction <maximumf>, %87, %cst_29 [2] : vector<1x8x8xf32> to vector<1x8xf32>
    %89 = vector.shape_cast %88 : vector<1x8xf32> to vector<1x8x1xf32>
    %90 = vector.broadcast %89 : vector<1x8x1xf32> to vector<1x8x8xf32>
    %91 = arith.subf %87, %90 : vector<1x8x8xf32>
    %92 = math.exp %91 : vector<1x8x8xf32>
    %cst_30 = arith.constant dense<0.000000e+00> : vector<1x8xf32>
    %93 = vector.multi_reduction <add>, %92, %cst_30 [2] : vector<1x8x8xf32> to vector<1x8xf32>
    %94 = vector.shape_cast %93 : vector<1x8xf32> to vector<1x8x1xf32>
    %95 = tpu.reciprocal %94 : vector<1x8x1xf32> -> vector<1x8x1xf32>
    %96 = vector.broadcast %95 : vector<1x8x1xf32> to vector<1x8x8xf32>
    %97 = arith.mulf %92, %96 : vector<1x8x8xf32>
    %98 = arith.truncf %97 : vector<1x8x8xf32> to vector<1x8x8xbf16>
    %cst_31 = arith.constant dense<0.000000e+00> : vector<1x8x8xf32>
    %99 = tpu.matmul %98, %82, %cst_31 {dimension_numbers = #tpu.dot_dimension_numbers<[2], [1], [1], [2], [0, 0, 0, 1, 1, 2], [0], [0]>} : vector<1x8x8xbf16>, vector<1x8x8xbf16>, vector<1x8x8xf32> -> vector<1x8x8xf32>
    %100 = vector.extract_strided_slice %52 {offsets = [0, 0, 16], sizes = [1, 8, 8], strides = [1, 1, 1]} : vector<1x8x32xbf16> to vector<1x8x8xbf16>
    %101 = vector.extract_strided_slice %55 {offsets = [0, 0, 16], sizes = [1, 8, 8], strides = [1, 1, 1]} : vector<1x8x32xbf16> to vector<1x8x8xbf16>
    %102 = vector.extract_strided_slice %58 {offsets = [0, 0, 16], sizes = [1, 8, 8], strides = [1, 1, 1]} : vector<1x8x32xbf16> to vector<1x8x8xbf16>
    %cst_32 = arith.constant dense<0.000000e+00> : vector<1x8x8xf32>
    %103 = tpu.matmul %100, %101, %cst_32 {dimension_numbers = #tpu.dot_dimension_numbers<[2], [2], [1], [1], [0, 0, 0, 1, 1, 1], [0], [0]>} : vector<1x8x8xbf16>, vector<1x8x8xbf16>, vector<1x8x8xf32> -> vector<1x8x8xf32>
    %cst_33 = arith.constant 0.353553385 : f32
    %104 = vector.broadcast %cst_33 : f32 to vector<1x8x8xf32>
    %105 = arith.mulf %103, %104 : vector<1x8x8xf32>
    %106 = vector.broadcast %59 : vector<1x1x8xf32> to vector<1x8x8xf32>
    %107 = arith.addf %105, %106 : vector<1x8x8xf32>
    %cst_34 = arith.constant dense<0xFF800000> : vector<1x8xf32>
    %108 = vector.multi_reduction <maximumf>, %107, %cst_34 [2] : vector<1x8x8xf32> to vector<1x8xf32>
    %109 = vector.shape_cast %108 : vector<1x8xf32> to vector<1x8x1xf32>
    %110 = vector.broadcast %109 : vector<1x8x1xf32> to vector<1x8x8xf32>
    %111 = arith.subf %107, %110 : vector<1x8x8xf32>
    %112 = math.exp %111 : vector<1x8x8xf32>
    %cst_35 = arith.constant dense<0.000000e+00> : vector<1x8xf32>
    %113 = vector.multi_reduction <add>, %112, %cst_35 [2] : vector<1x8x8xf32> to vector<1x8xf32>
    %114 = vector.shape_cast %113 : vector<1x8xf32> to vector<1x8x1xf32>
    %115 = tpu.reciprocal %114 : vector<1x8x1xf32> -> vector<1x8x1xf32>
    %116 = vector.broadcast %115 : vector<1x8x1xf32> to vector<1x8x8xf32>
    %117 = arith.mulf %112, %116 : vector<1x8x8xf32>
    %118 = arith.truncf %117 : vector<1x8x8xf32> to vector<1x8x8xbf16>
    %cst_36 = arith.constant dense<0.000000e+00> : vector<1x8x8xf32>
    %119 = tpu.matmul %118, %102, %cst_36 {dimension_numbers = #tpu.dot_dimension_numbers<[2], [1], [1], [2], [0, 0, 0, 1, 1, 2], [0], [0]>} : vector<1x8x8xbf16>, vector<1x8x8xbf16>, vector<1x8x8xf32> -> vector<1x8x8xf32>
    %120 = vector.extract_strided_slice %52 {offsets = [0, 0, 24], sizes = [1, 8, 8], strides = [1, 1, 1]} : vector<1x8x32xbf16> to vector<1x8x8xbf16>
    %121 = vector.extract_strided_slice %55 {offsets = [0, 0, 24], sizes = [1, 8, 8], strides = [1, 1, 1]} : vector<1x8x32xbf16> to vector<1x8x8xbf16>
    %122 = vector.extract_strided_slice %58 {offsets = [0, 0, 24], sizes = [1, 8, 8], strides = [1, 1, 1]} : vector<1x8x32xbf16> to vector<1x8x8xbf16>
    %cst_37 = arith.constant dense<0.000000e+00> : vector<1x8x8xf32>
    %123 = tpu.matmul %120, %121, %cst_37 {dimension_numbers = #tpu.dot_dimension_numbers<[2], [2], [1], [1], [0, 0, 0, 1, 1, 1], [0], [0]>} : vector<1x8x8xbf16>, vector<1x8x8xbf16>, vector<1x8x8xf32> -> vector<1x8x8xf32>
    %cst_38 = arith.constant 0.353553385 : f32
    %124 = vector.broadcast %cst_38 : f32 to vector<1x8x8xf32>
    %125 = arith.mulf %123, %124 : vector<1x8x8xf32>
    %126 = vector.broadcast %59 : vector<1x1x8xf32> to vector<1x8x8xf32>
    %127 = arith.addf %125, %126 : vector<1x8x8xf32>
    %cst_39 = arith.constant dense<0xFF800000> : vector<1x8xf32>
    %128 = vector.multi_reduction <maximumf>, %127, %cst_39 [2] : vector<1x8x8xf32> to vector<1x8xf32>
    %129 = vector.shape_cast %128 : vector<1x8xf32> to vector<1x8x1xf32>
    %130 = vector.broadcast %129 : vector<1x8x1xf32> to vector<1x8x8xf32>
    %131 = arith.subf %127, %130 : vector<1x8x8xf32>
    %132 = math.exp %131 : vector<1x8x8xf32>
    %cst_40 = arith.constant dense<0.000000e+00> : vector<1x8xf32>
    %133 = vector.multi_reduction <add>, %132, %cst_40 [2] : vector<1x8x8xf32> to vector<1x8xf32>
    %134 = vector.shape_cast %133 : vector<1x8xf32> to vector<1x8x1xf32>
    %135 = tpu.reciprocal %134 : vector<1x8x1xf32> -> vector<1x8x1xf32>
    %136 = vector.broadcast %135 : vector<1x8x1xf32> to vector<1x8x8xf32>
    %137 = arith.mulf %132, %136 : vector<1x8x8xf32>
    %138 = arith.truncf %137 : vector<1x8x8xf32> to vector<1x8x8xbf16>
    %cst_41 = arith.constant dense<0.000000e+00> : vector<1x8x8xf32>
    %139 = tpu.matmul %138, %122, %cst_41 {dimension_numbers = #tpu.dot_dimension_numbers<[2], [1], [1], [2], [0, 0, 0, 1, 1, 2], [0], [0]>} : vector<1x8x8xbf16>, vector<1x8x8xbf16>, vector<1x8x8xf32> -> vector<1x8x8xf32>
    %140 = tpu.concatenate %79, %99, %119, %139 in 2 : vector<1x8x8xf32>, vector<1x8x8xf32>, vector<1x8x8xf32>, vector<1x8x8xf32> -> vector<1x8x32xf32>
    %141 = vector.shape_cast %140 : vector<1x8x32xf32> to vector<8x32xf32>
    %142 = arith.truncf %141 : vector<8x32xf32> to vector<8x32xbf16>
    %143 = arith.index_cast %9 : i32 to index
    %c0_42 = arith.constant 0 : index
    %c0_43 = arith.constant 0 : index
    %144 = vector.load %arg8[%143, %c0_42, %c0_43] : memref<2x32x32xbf16, #tpu.memory_space<vmem>>, vector<1x32x32xbf16>
    %145 = vector.shape_cast %144 : vector<1x32x32xbf16> to vector<32x32xbf16>
    %cst_44 = arith.constant dense<0.000000e+00> : vector<8x32xf32>
    %146 = tpu.matmul %142, %145, %cst_44 {dimension_numbers = #tpu.dot_dimension_numbers<[1], [0], [0], [1], [0, 0, 1, 1], [], []>} : vector<8x32xbf16>, vector<32x32xbf16>, vector<8x32xf32> -> vector<8x32xf32>
    %147 = arith.index_cast %9 : i32 to index
    %c0_45 = arith.constant 0 : index
    %c0_46 = arith.constant 0 : index
    %148 = vector.load %arg9[%147, %c0_45, %c0_46] : memref<2x1x32xf32, #tpu.memory_space<vmem>>, vector<1x1x32xf32>
    %149 = vector.shape_cast %148 : vector<1x1x32xf32> to vector<1x32xf32>
    %150 = vector.broadcast %149 : vector<1x32xf32> to vector<8x32xf32>
    %151 = arith.addf %146, %150 : vector<8x32xf32>
    %152 = arith.index_cast %9 : i32 to index
    %c0_47 = arith.constant 0 : index
    %c0_48 = arith.constant 0 : index
    %153 = vector.load %arg14[%152, %c0_47, %c0_48] : memref<2x1x1xf32, #tpu.memory_space<vmem>>, vector<1x1x1xf32>
    %154 = vector.shape_cast %153 : vector<1x1x1xf32> to vector<1x1xf32>
    %155 = vector.broadcast %154 : vector<1x1xf32> to vector<8x32xf32>
    %156 = arith.mulf %155, %151 : vector<8x32xf32>
    %157 = arith.addf %39, %156 : vector<8x32xf32>
    %158 = arith.truncf %157 : vector<8x32xf32> to vector<8x32xbf16>
    %159 = arith.index_cast %9 : i32 to index
    %c0_49 = arith.constant 0 : index
    %c0_50 = arith.constant 0 : index
    %160 = vector.load %arg10[%159, %c0_49, %c0_50] : memref<2x32x64xbf16, #tpu.memory_space<vmem>>, vector<1x32x64xbf16>
    %161 = vector.shape_cast %160 : vector<1x32x64xbf16> to vector<32x64xbf16>
    %cst_51 = arith.constant dense<0.000000e+00> : vector<8x64xf32>
    %162 = tpu.matmul %158, %161, %cst_51 {dimension_numbers = #tpu.dot_dimension_numbers<[1], [0], [0], [1], [0, 0, 1, 1], [], []>} : vector<8x32xbf16>, vector<32x64xbf16>, vector<8x64xf32> -> vector<8x64xf32>
    %163 = arith.index_cast %9 : i32 to index
    %c0_52 = arith.constant 0 : index
    %c0_53 = arith.constant 0 : index
    %164 = vector.load %arg11[%163, %c0_52, %c0_53] : memref<2x1x64xf32, #tpu.memory_space<vmem>>, vector<1x1x64xf32>
    %165 = vector.shape_cast %164 : vector<1x1x64xf32> to vector<1x64xf32>
    %166 = vector.broadcast %165 : vector<1x64xf32> to vector<8x64xf32>
    %167 = arith.addf %162, %166 : vector<8x64xf32>
    %cst_54 = arith.constant 0.000000e+00 : f32
    %168 = vector.broadcast %cst_54 : f32 to vector<8x64xf32>
    %169 = arith.maximumf %167, %168 : vector<8x64xf32>
    %170 = arith.truncf %169 : vector<8x64xf32> to vector<8x64xbf16>
    %171 = arith.index_cast %9 : i32 to index
    %c0_55 = arith.constant 0 : index
    %c0_56 = arith.constant 0 : index
    %172 = vector.load %arg12[%171, %c0_55, %c0_56] : memref<2x64x32xbf16, #tpu.memory_space<vmem>>, vector<1x64x32xbf16>
    %173 = vector.shape_cast %172 : vector<1x64x32xbf16> to vector<64x32xbf16>
    %cst_57 = arith.constant dense<0.000000e+00> : vector<8x32xf32>
    %174 = tpu.matmul %170, %173, %cst_57 {dimension_numbers = #tpu.dot_dimension_numbers<[1], [0], [0], [1], [0, 0, 1, 1], [], []>} : vector<8x64xbf16>, vector<64x32xbf16>, vector<8x32xf32> -> vector<8x32xf32>
    %175 = arith.index_cast %9 : i32 to index
    %c0_58 = arith.constant 0 : index
    %c0_59 = arith.constant 0 : index
    %176 = vector.load %arg13[%175, %c0_58, %c0_59] : memref<2x1x32xf32, #tpu.memory_space<vmem>>, vector<1x1x32xf32>
    %177 = vector.shape_cast %176 : vector<1x1x32xf32> to vector<1x32xf32>
    %178 = vector.broadcast %177 : vector<1x32xf32> to vector<8x32xf32>
    %179 = arith.addf %174, %178 : vector<8x32xf32>
    %180 = vector.broadcast %154 : vector<1x1xf32> to vector<8x32xf32>
    %181 = arith.mulf %180, %179 : vector<8x32xf32>
    %182 = arith.addf %157, %181 : vector<8x32xf32>
    %c0_60 = arith.constant 0 : index
    %c0_61 = arith.constant 0 : index
    %183 = vector.load %arg15[%c0_60, %c0_61] : memref<8x32xf32, #tpu.memory_space<vmem>>, vector<8x32xf32>
    tpu.vector_store %arg15[%c0_60, %c0_61], %182 {strides = array<i32>} : memref<8x32xf32, #tpu.memory_space<vmem>>, vector<8x32xf32>,
    return
  }
  func.func @transform_0(%arg0: i32, %arg1: i32) -> (i32, i32) {
    %c0_i32 = arith.constant 0 : i32
    %c0_i32_0 = arith.constant 0 : i32
    return %arg0, %c0_i32 : i32, i32
  }
  func.func @transform_1(%arg0: i32, %arg1: i32) -> (i32, i32, i32) {
    %c0_i32 = arith.constant 0 : i32
    %c0_i32_0 = arith.constant 0 : i32
    %c0_i32_1 = arith.constant 0 : i32
    return %arg0, %c0_i32, %c0_i32_0 : i32, i32, i32
  }
  func.func @transform_2(%arg0: i32, %arg1: i32) -> (i32, i32, i32) {
    %c0_i32 = arith.constant 0 : i32
    %c0_i32_0 = arith.constant 0 : i32
    %c0_i32_1 = arith.constant 0 : i32
    %c0_i32_2 = arith.constant 0 : i32
    return %c0_i32, %c0_i32_0, %c0_i32_1 : i32, i32, i32
  }
  func.func @transform_3(%arg0: i32, %arg1: i32) -> (i32, i32, i32) {
    %c0_i32 = arith.constant 0 : i32
    %c0_i32_0 = arith.constant 0 : i32
    %c0_i32_1 = arith.constant 0 : i32
    %c0_i32_2 = arith.constant 0 : i32
    return %c0_i32, %c0_i32_0, %c0_i32_1 : i32, i32, i32
  }
  func.func @transform_4(%arg0: i32, %arg1: i32) -> (i32, i32, i32) {
    %c0_i32 = arith.constant 0 : i32
    %c0_i32_0 = arith.constant 0 : i32
    %c0_i32_1 = arith.constant 0 : i32
    %c0_i32_2 = arith.constant 0 : i32
    return %c0_i32, %c0_i32_0, %c0_i32_1 : i32, i32, i32
  }
  func.func @transform_5(%arg0: i32, %arg1: i32) -> (i32, i32, i32) {
    %c0_i32 = arith.constant 0 : i32
    %c0_i32_0 = arith.constant 0 : i32
    %c0_i32_1 = arith.constant 0 : i32
    %c0_i32_2 = arith.constant 0 : i32
    return %c0_i32, %c0_i32_0, %c0_i32_1 : i32, i32, i32
  }
  func.func @transform_6(%arg0: i32, %arg1: i32) -> (i32, i32, i32) {
    %c0_i32 = arith.constant 0 : i32
    %c0_i32_0 = arith.constant 0 : i32
    %c0_i32_1 = arith.constant 0 : i32
    %c0_i32_2 = arith.constant 0 : i32
    return %c0_i32, %c0_i32_0, %c0_i32_1 : i32, i32, i32
  }
  func.func @transform_7(%arg0: i32, %arg1: i32) -> (i32, i32, i32) {
    %c0_i32 = arith.constant 0 : i32
    %c0_i32_0 = arith.constant 0 : i32
    %c0_i32_1 = arith.constant 0 : i32
    %c0_i32_2 = arith.constant 0 : i32
    return %c0_i32, %c0_i32_0, %c0_i32_1 : i32, i32, i32
  }
  func.func @transform_8(%arg0: i32, %arg1: i32) -> (i32, i32, i32) {
    %c0_i32 = arith.constant 0 : i32
    %c0_i32_0 = arith.constant 0 : i32
    %c0_i32_1 = arith.constant 0 : i32
    %c0_i32_2 = arith.constant 0 : i32
    return %c0_i32, %c0_i32_0, %c0_i32_1 : i32, i32, i32
  }
  func.func @transform_9(%arg0: i32, %arg1: i32) -> (i32, i32, i32) {
    %c0_i32 = arith.constant 0 : i32
    %c0_i32_0 = arith.constant 0 : i32
    %c0_i32_1 = arith.constant 0 : i32
    %c0_i32_2 = arith.constant 0 : i32
    return %c0_i32, %c0_i32_0, %c0_i32_1 : i32, i32, i32
  }
  func.func @transform_10(%arg0: i32, %arg1: i32) -> (i32, i32, i32) {
    %c0_i32 = arith.constant 0 : i32
    %c0_i32_0 = arith.constant 0 : i32
    %c0_i32_1 = arith.constant 0 : i32
    %c0_i32_2 = arith.constant 0 : i32
    return %c0_i32, %c0_i32_0, %c0_i32_1 : i32, i32, i32
  }
  func.func @transform_11(%arg0: i32, %arg1: i32) -> (i32, i32, i32) {
    %c0_i32 = arith.constant 0 : i32
    %c0_i32_0 = arith.constant 0 : i32
    %c0_i32_1 = arith.constant 0 : i32
    %c0_i32_2 = arith.constant 0 : i32
    return %c0_i32, %c0_i32_0, %c0_i32_1 : i32, i32, i32
  }
  func.func @transform_12(%arg0: i32, %arg1: i32) -> (i32, i32, i32) {
    %c0_i32 = arith.constant 0 : i32
    %c0_i32_0 = arith.constant 0 : i32
    %c0_i32_1 = arith.constant 0 : i32
    %c0_i32_2 = arith.constant 0 : i32
    return %c0_i32, %c0_i32_0, %c0_i32_1 : i32, i32, i32
  }
  func.func @transform_13(%arg0: i32, %arg1: i32) -> (i32, i32) {
    %c0_i32 = arith.constant 0 : i32
    %c0_i32_0 = arith.constant 0 : i32
    return %arg0, %c0_i32 : i32, i32
  }
}

</mosaic_0001>

<llo_original>
// kernel: tpu_custom_call.1
$region0: #{tpu_custom_call.1}
  #allocation0 [shape = 'u32[]', space=smem, size = 0x4, offset = 0x4, fixed_abs, tag = 'smem constant byte address 0x4 - core index']
  #allocation1 [shape = 'u32[72,128]{1,0:T(1,128)}', space=vmem, size = 0x9000, scoped, tag = 'internal scratch']
  %s0 = inlined_call_operand.hbm [shape: f32[16,32], index: 0, kind: input, shape index: {}, may-alias: {0,13}]
  %s1 = inlined_call_operand.vmem [shape: f32[2,1,8], index: 1, kind: input, shape index: {}]
  %s2 = inlined_call_operand.vmem [shape: f32[2,1,32], index: 2, kind: input, shape index: {}]
  %s3 = inlined_call_operand.vmem [shape: f32[2,1,32], index: 3, kind: input, shape index: {}]
  %s4 = inlined_call_operand.vmem [shape: bf16[2,32,96], index: 4, kind: input, shape index: {}]
  %s5 = inlined_call_operand.vmem [shape: f32[2,1,96], index: 5, kind: input, shape index: {}]
  %s6 = inlined_call_operand.vmem [shape: bf16[2,32,32], index: 6, kind: input, shape index: {}]
  %s7 = inlined_call_operand.vmem [shape: f32[2,1,32], index: 7, kind: input, shape index: {}]
  %s8 = inlined_call_operand.vmem [shape: bf16[2,32,64], index: 8, kind: input, shape index: {}]
  %s9 = inlined_call_operand.hbm [shape: f32[2,1,64], index: 9, kind: input, shape index: {}]
  %s10 = inlined_call_operand.vmem [shape: bf16[2,64,32], index: 10, kind: input, shape index: {}]
  %s11 = inlined_call_operand.hbm [shape: f32[2,1,32], index: 11, kind: input, shape index: {}]
  %s12 = inlined_call_operand.vmem [shape: f32[2,1,1], index: 12, kind: input, shape index: {}]
  %s13 = inlined_call_operand.hbm [shape: f32[16,32], index: 13, kind: output, shape index: {}, may-alias: {0,13}]
  %s14 = sld [smem:[#allocation0]]
  $region101: #{tpu_custom_call.1} parent=0
    _
  %s16 = ssub.s32 1, %s14
  %s17 = scalar_select 0, %s16, %s14
  $region1: #{tpu_custom_call.1} parent=0
    #allocation2 [shape = 'u8[8192]{0}', space=vmem, size = 0x2000, scoped, tag = 'input window, operand 0']
    #allocation3 [shape = 's32[2]{0}', space=sflag, size = 0x8, scoped, tag = 'scoped memory for tpu_custom_call.1']
    #allocation4 [shape = 's32[2]{0}', space=sflag, size = 0x8, scoped, tag = 'scoped memory for tpu_custom_call.1']
    #allocation5 [shape = 'u8[1024]{0}', space=vmem, size = 0x400, scoped, tag = 'input window, operand 9, single buffered']
    #allocation6 [shape = 's32[1]{0}', space=sflag, size = 0x4, scoped, tag = 'scoped memory for tpu_custom_call.1']
    #allocation7 [shape = 'u8[1024]{0}', space=vmem, size = 0x400, scoped, tag = 'input window, operand 11, single buffered']
    #allocation8 [shape = 'u8[8192]{0}', space=vmem, size = 0x2000, scoped, tag = 'output window, operand 0']
    %18 = vsyncpa [#allocation3], 0
    %s19 = scalar_lea.sflag [#allocation3], 1
    %20 = vsyncpa %s19, 0
    %21 = vsyncpa [#allocation6], 0
    %22 = vsyncpa [#allocation4], 0
    %s23 = scalar_lea.sflag [#allocation4], 1
    %24 = vsyncpa %s23, 0
    loop: start=0, step=1, limit=10
    $region2: #{tpu_custom_call.1} parent=1 // loop_pre_header
      _
    $region3: #{tpu_custom_call.1} parent=1 // loop_header
      %s26 = sphi 0, %s30
      %p27 = scmp.ge.s32.totalorder %s26, 10
      %s33 = sphi 0, %s45
      %s34 = sphi 0, %s41
      %s35 = sphi 0, %s33
      %s36 = sphi 0, %s34
      %s37 = sphi 0, %s35
      %s38 = sphi 0, %s36
      %s48 = sphi 0, %s50
      %s51 = sphi 0, %s48
      %s52 = sphi 0, %s51
      %s68 = sphi 0, %s52
      %s74 = sphi 0, %s76
      %s77 = sphi 0, %s74
      %s78 = sphi 0, %s77
      %s94 = sphi 0, %s78
      %s98 = sphi 0, %s98
      %s100 = sphi 0, %s98
      %s101 = sphi 0, %s100
      %s115 = sphi 0, %s101
      %s119 = sphi 0, %s119
      %s121 = sphi 0, %s119
      %s122 = sphi 0, %s121
      %s136 = sphi 0, %s122
      %s140 = sphi 0, %s140
      %s142 = sphi 0, %s140
      %s143 = sphi 0, %s142
      %s157 = sphi 0, %s143
      %s161 = sphi 0, %s161
      %s163 = sphi 0, %s161
      %s164 = sphi 0, %s163
      %s178 = sphi 0, %s164
      %s182 = sphi 0, %s182
      %s184 = sphi 0, %s182
      %s185 = sphi 0, %s184
      %s199 = sphi 0, %s185
      %s203 = sphi 0, %s203
      %s205 = sphi 0, %s203
      %s206 = sphi 0, %s205
      %s220 = sphi 0, %s206
      %s224 = sphi 0, %s224
      %s226 = sphi 0, %s224
      %s227 = sphi 0, %s226
      %s241 = sphi 0, %s227
      %s245 = sphi 0, %s245
      %s247 = sphi 0, %s245
      %s248 = sphi 0, %s247
      %s262 = sphi 0, %s248
      %s266 = sphi 0, %s266
      %s268 = sphi 0, %s266
      %s269 = sphi 0, %s268
      %s283 = sphi 0, %s269
      %s287 = sphi 0, %s287
      %s289 = sphi 0, %s287
      %s290 = sphi 0, %s289
      %s304 = sphi 0, %s290
      %s308 = sphi 0, %s308
      %s310 = sphi 0, %s308
      %s311 = sphi 0, %s310
      %s325 = sphi 0, %s311
      %s331 = sphi 0, %s333
      %s334 = sphi 0, %s331
      %s335 = sphi 0, %s334
      %s351 = sphi 0, %s335
    $region4: #{tpu_custom_call.1} parent=1 // loop_header_branch
      %29 = sbr.rel (%p27) target = $region8
    $region5: #{tpu_custom_call.1} parent=1 // loop_body
      %s31 = ssub.s32 %s26, 1
      %s32 = ssub.s32 %s26, 2
      %s39 = sadd.s32 1, %s34
      %p40 = scmp.ge.s32.totalorder %s39, 4
      %s41 = scalar_select %p40, 0, %s39
      %s42 = sadd.s32 1, %s33
      %s43 = scalar_select %p40, %s42, %s33
      %p44 = scmp.ge.s32.totalorder %s43, 2
      %s45 = scalar_select %p44, 0, %s43
      %s46 = ssub.s32 %s33, %s45
      %p47 = scmp.eq.s32.totalorder %s46, 0
      %s49 = sadd.s32 %s48, 1
      %s50 = scalar_select %p47, %s48, %s49
      %p53 = pneg %p47
      %p54 = scmp.eq.s32.totalorder %s26, 7
      %p55 = por %p53, %p54
      %p56 = scmp.ne.s32.totalorder %s48, %s51
      %p57 = scmp.eq.s32.totalorder %s26, 0
      %p58 = por %p56, %p57
      %p59 = scmp.ne.s32.totalorder %s48, %s51
      %p60 = scmp.eq.s32.totalorder %s31, 7
      %p61 = por %p59, %p60
      %p62 = scmp.ne.s32.totalorder %s51, %s52
      %p63 = scmp.eq.s32.totalorder %s31, 0
      %p64 = por %p62, %p63
      %p65 = scmp.ne.s32.totalorder %s51, %s52
      %p66 = scmp.eq.s32.totalorder %s32, 7
      %p67 = por %p65, %p66
      %p69 = scmp.ne.s32.totalorder %s52, %s68
      %p70 = scmp.eq.s32.totalorder %s32, 0
      %p71 = por %p69, %p70
      %s72 = ssub.s32 %s33, %s45
      %p73 = scmp.eq.s32.totalorder %s72, 0
      %s75 = sadd.s32 %s74, 1
      %s76 = scalar_select %p73, %s74, %s75
      %p79 = pneg %p73
      %p80 = scmp.eq.s32.totalorder %s26, 7
      %p81 = por %p79, %p80
      %p82 = scmp.ne.s32.totalorder %s74, %s77
      %p83 = scmp.eq.s32.totalorder %s26, 0
      %p84 = por %p82, %p83
      %p85 = scmp.ne.s32.totalorder %s74, %s77
      %p86 = scmp.eq.s32.totalorder %s31, 7
      %p87 = por %p85, %p86
      %p88 = scmp.ne.s32.totalorder %s77, %s78
      %p89 = scmp.eq.s32.totalorder %s31, 0
      %p90 = por %p88, %p89
      %p91 = scmp.ne.s32.totalorder %s77, %s78
      %p92 = scmp.eq.s32.totalorder %s32, 7
      %p93 = por %p91, %p92
      %p95 = scmp.ne.s32.totalorder %s78, %s94
      %p96 = scmp.eq.s32.totalorder %s32, 0
      %p97 = por %p95, %p96
      %s99 = sadd.s32 %s98, 1
      %p102 = scmp.eq.s32.totalorder %s26, 7
      %p103 = scmp.ne.s32.totalorder %s98, %s100
      %p104 = scmp.eq.s32.totalorder %s26, 0
      %p105 = por %p103, %p104
      %p106 = scmp.ne.s32.totalorder %s98, %s100
      %p107 = scmp.eq.s32.totalorder %s31, 7
      %p108 = por %p106, %p107
      %p109 = scmp.ne.s32.totalorder %s100, %s101
      %p110 = scmp.eq.s32.totalorder %s31, 0
      %p111 = por %p109, %p110
      %p112 = scmp.ne.s32.totalorder %s100, %s101
      %p113 = scmp.eq.s32.totalorder %s32, 7
      %p114 = por %p112, %p113
      %p116 = scmp.ne.s32.totalorder %s101, %s115
      %p117 = scmp.eq.s32.totalorder %s32, 0
      %p118 = por %p116, %p117
      %s120 = sadd.s32 %s119, 1
      %p123 = scmp.eq.s32.totalorder %s26, 7
      %p124 = scmp.ne.s32.totalorder %s119, %s121
      %p125 = scmp.eq.s32.totalorder %s26, 0
      %p126 = por %p124, %p125
      %p127 = scmp.ne.s32.totalorder %s119, %s121
      %p128 = scmp.eq.s32.totalorder %s31, 7
      %p129 = por %p127, %p128
      %p130 = scmp.ne.s32.totalorder %s121, %s122
      %p131 = scmp.eq.s32.totalorder %s31, 0
      %p132 = por %p130, %p131
      %p133 = scmp.ne.s32.totalorder %s121, %s122
      %p134 = scmp.eq.s32.totalorder %s32, 7
      %p135 = por %p133, %p134
      %p137 = scmp.ne.s32.totalorder %s122, %s136
      %p138 = scmp.eq.s32.totalorder %s32, 0
      %p139 = por %p137, %p138
      %s141 = sadd.s32 %s140, 1
      %p144 = scmp.eq.s32.totalorder %s26, 7
      %p145 = scmp.ne.s32.totalorder %s140, %s142
      %p146 = scmp.eq.s32.totalorder %s26, 0
      %p147 = por %p145, %p146
      %p148 = scmp.ne.s32.totalorder %s140, %s142
      %p149 = scmp.eq.s32.totalorder %s31, 7
      %p150 = por %p148, %p149
      %p151 = scmp.ne.s32.totalorder %s142, %s143
      %p152 = scmp.eq.s32.totalorder %s31, 0
      %p153 = por %p151, %p152
      %p154 = scmp.ne.s32.totalorder %s142, %s143
      %p155 = scmp.eq.s32.totalorder %s32, 7
      %p156 = por %p154, %p155
      %p158 = scmp.ne.s32.totalorder %s143, %s157
      %p159 = scmp.eq.s32.totalorder %s32, 0
      %p160 = por %p158, %p159
      %s162 = sadd.s32 %s161, 1
      %p165 = scmp.eq.s32.totalorder %s26, 7
      %p166 = scmp.ne.s32.totalorder %s161, %s163
      %p167 = scmp.eq.s32.totalorder %s26, 0
      %p168 = por %p166, %p167
      %p169 = scmp.ne.s32.totalorder %s161, %s163
      %p170 = scmp.eq.s32.totalorder %s31, 7
      %p171 = por %p169, %p170
      %p172 = scmp.ne.s32.totalorder %s163, %s164
      %p173 = scmp.eq.s32.totalorder %s31, 0
      %p174 = por %p172, %p173
      %p175 = scmp.ne.s32.totalorder %s163, %s164
      %p176 = scmp.eq.s32.totalorder %s32, 7
      %p177 = por %p175, %p176
      %p179 = scmp.ne.s32.totalorder %s164, %s178
      %p180 = scmp.eq.s32.totalorder %s32, 0
      %p181 = por %p179, %p180
      %s183 = sadd.s32 %s182, 1
      %p186 = scmp.eq.s32.totalorder %s26, 7
      %p187 = scmp.ne.s32.totalorder %s182, %s184
      %p188 = scmp.eq.s32.totalorder %s26, 0
      %p189 = por %p187, %p188
      %p190 = scmp.ne.s32.totalorder %s182, %s184
      %p191 = scmp.eq.s32.totalorder %s31, 7
      %p192 = por %p190, %p191
      %p193 = scmp.ne.s32.totalorder %s184, %s185
      %p194 = scmp.eq.s32.totalorder %s31, 0
      %p195 = por %p193, %p194
      %p196 = scmp.ne.s32.totalorder %s184, %s185
      %p197 = scmp.eq.s32.totalorder %s32, 7
      %p198 = por %p196, %p197
      %p200 = scmp.ne.s32.totalorder %s185, %s199
      %p201 = scmp.eq.s32.totalorder %s32, 0
      %p202 = por %p200, %p201
      %s204 = sadd.s32 %s203, 1
      %p207 = scmp.eq.s32.totalorder %s26, 7
      %p208 = scmp.ne.s32.totalorder %s203, %s205
      %p209 = scmp.eq.s32.totalorder %s26, 0
      %p210 = por %p208, %p209
      %p211 = scmp.ne.s32.totalorder %s203, %s205
      %p212 = scmp.eq.s32.totalorder %s31, 7
      %p213 = por %p211, %p212
      %p214 = scmp.ne.s32.totalorder %s205, %s206
      %p215 = scmp.eq.s32.totalorder %s31, 0
      %p216 = por %p214, %p215
      %p217 = scmp.ne.s32.totalorder %s205, %s206
      %p218 = scmp.eq.s32.totalorder %s32, 7
      %p219 = por %p217, %p218
      %p221 = scmp.ne.s32.totalorder %s206, %s220
      %p222 = scmp.eq.s32.totalorder %s32, 0
      %p223 = por %p221, %p222
      %s225 = sadd.s32 %s224, 1
      %p228 = scmp.eq.s32.totalorder %s26, 7
      %p229 = scmp.ne.s32.totalorder %s224, %s226
      %p230 = scmp.eq.s32.totalorder %s26, 0
      %p231 = por %p229, %p230
      %p232 = scmp.ne.s32.totalorder %s224, %s226
      %p233 = scmp.eq.s32.totalorder %s31, 7
      %p234 = por %p232, %p233
      %p235 = scmp.ne.s32.totalorder %s226, %s227
      %p236 = scmp.eq.s32.totalorder %s31, 0
      %p237 = por %p235, %p236
      %p238 = scmp.ne.s32.totalorder %s226, %s227
      %p239 = scmp.eq.s32.totalorder %s32, 7
      %p240 = por %p238, %p239
      %p242 = scmp.ne.s32.totalorder %s227, %s241
      %p243 = scmp.eq.s32.totalorder %s32, 0
      %p244 = por %p242, %p243
      %s246 = sadd.s32 %s245, 1
      %p249 = scmp.eq.s32.totalorder %s26, 7
      %p250 = scmp.ne.s32.totalorder %s245, %s247
      %p251 = scmp.eq.s32.totalorder %s26, 0
      %p252 = por %p250, %p251
      %p253 = scmp.ne.s32.totalorder %s245, %s247
      %p254 = scmp.eq.s32.totalorder %s31, 7
      %p255 = por %p253, %p254
      %p256 = scmp.ne.s32.totalorder %s247, %s248
      %p257 = scmp.eq.s32.totalorder %s31, 0
      %p258 = por %p256, %p257
      %p259 = scmp.ne.s32.totalorder %s247, %s248
      %p260 = scmp.eq.s32.totalorder %s32, 7
      %p261 = por %p259, %p260
      %p263 = scmp.ne.s32.totalorder %s248, %s262
      %p264 = scmp.eq.s32.totalorder %s32, 0
      %p265 = por %p263, %p264
      %s267 = sadd.s32 %s266, 1
      %p270 = scmp.eq.s32.totalorder %s26, 7
      %p271 = scmp.ne.s32.totalorder %s266, %s268
      %p272 = scmp.eq.s32.totalorder %s26, 0
      %p273 = por %p271, %p272
      %p274 = scmp.ne.s32.totalorder %s266, %s268
      %p275 = scmp.eq.s32.totalorder %s31, 7
      %p276 = por %p274, %p275
      %p277 = scmp.ne.s32.totalorder %s268, %s269
      %p278 = scmp.eq.s32.totalorder %s31, 0
      %p279 = por %p277, %p278
      %p280 = scmp.ne.s32.totalorder %s268, %s269
      %p281 = scmp.eq.s32.totalorder %s32, 7
      %p282 = por %p280, %p281
      %p284 = scmp.ne.s32.totalorder %s269, %s283
      %p285 = scmp.eq.s32.totalorder %s32, 0
      %p286 = por %p284, %p285
      %s288 = sadd.s32 %s287, 1
      %p291 = scmp.eq.s32.totalorder %s26, 7
      %p292 = scmp.ne.s32.totalorder %s287, %s289
      %p293 = scmp.eq.s32.totalorder %s26, 0
      %p294 = por %p292, %p293
      %p295 = scmp.ne.s32.totalorder %s287, %s289
      %p296 = scmp.eq.s32.totalorder %s31, 7
      %p297 = por %p295, %p296
      %p298 = scmp.ne.s32.totalorder %s289, %s290
      %p299 = scmp.eq.s32.totalorder %s31, 0
      %p300 = por %p298, %p299
      %p301 = scmp.ne.s32.totalorder %s289, %s290
      %p302 = scmp.eq.s32.totalorder %s32, 7
      %p303 = por %p301, %p302
      %p305 = scmp.ne.s32.totalorder %s290, %s304
      %p306 = scmp.eq.s32.totalorder %s32, 0
      %p307 = por %p305, %p306
      %s309 = sadd.s32 %s308, 1
      %p312 = scmp.eq.s32.totalorder %s26, 7
      %p313 = scmp.ne.s32.totalorder %s308, %s310
      %p314 = scmp.eq.s32.totalorder %s26, 0
      %p315 = por %p313, %p314
      %p316 = scmp.ne.s32.totalorder %s308, %s310
      %p317 = scmp.eq.s32.totalorder %s31, 7
      %p318 = por %p316, %p317
      %p319 = scmp.ne.s32.totalorder %s310, %s311
      %p320 = scmp.eq.s32.totalorder %s31, 0
      %p321 = por %p319, %p320
      %p322 = scmp.ne.s32.totalorder %s310, %s311
      %p323 = scmp.eq.s32.totalorder %s32, 7
      %p324 = por %p322, %p323
      %p326 = scmp.ne.s32.totalorder %s311, %s325
      %p327 = scmp.eq.s32.totalorder %s32, 0
      %p328 = por %p326, %p327
      %s329 = ssub.s32 %s33, %s45
      %p330 = scmp.eq.s32.totalorder %s329, 0
      %s332 = sadd.s32 %s331, 1
      %s333 = scalar_select %p330, %s331, %s332
      %p336 = pneg %p330
      %p337 = scmp.eq.s32.totalorder %s26, 7
      %p338 = por %p336, %p337
      %p339 = scmp.ne.s32.totalorder %s331, %s334
      %p340 = scmp.eq.s32.totalorder %s26, 0
      %p341 = por %p339, %p340
      %p342 = scmp.ne.s32.totalorder %s331, %s334
      %p343 = scmp.eq.s32.totalorder %s31, 7
      %p344 = por %p342, %p343
      %p345 = scmp.ne.s32.totalorder %s334, %s335
      %p346 = scmp.eq.s32.totalorder %s31, 0
      %p347 = por %p345, %p346
      %p348 = scmp.ne.s32.totalorder %s334, %s335
      %p349 = scmp.eq.s32.totalorder %s32, 7
      %p350 = por %p348, %p349
      %p352 = scmp.ne.s32.totalorder %s335, %s351
      %p353 = scmp.eq.s32.totalorder %s32, 0
      %p354 = por %p352, %p353
      %p355 = scmp.le.s32.totalorder 1, %s26
      %p356 = scmp.lt.s32.totalorder %s26, 9
      %p357 = pnand %p355, %p356
      %p358 = pneg %p357
      // Predicated region
      $region9: #{tpu_custom_call.1} parent=5 // pred_check
        _
      $region10: #{tpu_custom_call.1} parent=5 // pred_check_branch
        %360 = sbr.rel (%p357) target = $region12
      $region11: #{tpu_custom_call.1} parent=5 // pred_region
        %s361 = ssub.s32 %s26, 1
        // Predicated region
        $region13: #{tpu_custom_call.1} parent=11 // pred_check
          %p362 = pneg %p111
        $region14: #{tpu_custom_call.1} parent=11 // pred_check_branch
          %364 = sbr.rel (%p362) target = $region16
        $region15: #{tpu_custom_call.1} parent=11 // pred_region
          _
        $region16: #{tpu_custom_call.1} parent=11 // pred_fallthru
          _
        // Predicated region
        $region17: #{tpu_custom_call.1} parent=11 // pred_check
          %p365 = pneg %p132
        $region18: #{tpu_custom_call.1} parent=11 // pred_check_branch
          %367 = sbr.rel (%p365) target = $region20
        $region19: #{tpu_custom_call.1} parent=11 // pred_region
          _
        $region20: #{tpu_custom_call.1} parent=11 // pred_fallthru
          _
        // Predicated region
        $region21: #{tpu_custom_call.1} parent=11 // pred_check
          %p368 = pneg %p153
        $region22: #{tpu_custom_call.1} parent=11 // pred_check_branch
          %370 = sbr.rel (%p368) target = $region24
        $region23: #{tpu_custom_call.1} parent=11 // pred_region
          _
        $region24: #{tpu_custom_call.1} parent=11 // pred_fallthru
          _
        // Predicated region
        $region25: #{tpu_custom_call.1} parent=11 // pred_check
          %p371 = pneg %p174
        $region26: #{tpu_custom_call.1} parent=11 // pred_check_branch
          %373 = sbr.rel (%p371) target = $region28
        $region27: #{tpu_custom_call.1} parent=11 // pred_region
          _
        $region28: #{tpu_custom_call.1} parent=11 // pred_fallthru
          _
        // Predicated region
        $region29: #{tpu_custom_call.1} parent=11 // pred_check
          %p374 = pneg %p195
        $region30: #{tpu_custom_call.1} parent=11 // pred_check_branch
          %376 = sbr.rel (%p374) target = $region32
        $region31: #{tpu_custom_call.1} parent=11 // pred_region
          _
        $region32: #{tpu_custom_call.1} parent=11 // pred_fallthru
          _
        // Predicated region
        $region33: #{tpu_custom_call.1} parent=11 // pred_check
          %p377 = pneg %p216
        $region34: #{tpu_custom_call.1} parent=11 // pred_check_branch
          %379 = sbr.rel (%p377) target = $region36
        $region35: #{tpu_custom_call.1} parent=11 // pred_region
          _
        $region36: #{tpu_custom_call.1} parent=11 // pred_fallthru
          _
        // Predicated region
        $region37: #{tpu_custom_call.1} parent=11 // pred_check
          %p380 = pneg %p237
        $region38: #{tpu_custom_call.1} parent=11 // pred_check_branch
          %382 = sbr.rel (%p380) target = $region40
        $region39: #{tpu_custom_call.1} parent=11 // pred_region
          _
        $region40: #{tpu_custom_call.1} parent=11 // pred_fallthru
          _
        // Predicated region
        $region41: #{tpu_custom_call.1} parent=11 // pred_check
          %p383 = pneg %p258
        $region42: #{tpu_custom_call.1} parent=11 // pred_check_branch
          %385 = sbr.rel (%p383) target = $region44
        $region43: #{tpu_custom_call.1} parent=11 // pred_region
          %387 = vsyncadd [#allocation6], 0
          %s388 = sshll.u32 %s9, 4
          %s389 = int_to_ptr.hbm [resolvable:$true] %s388
          %s390 = sshll.u32 [#allocation5], 4
          %s391 = int_to_ptr.vmem [resolvable:$true] %s390
          %396 = dma.hbm_to_vmem [thread:$0]  %s389, 32, %s391, [#allocation6], 16, 16, 1
        $region44: #{tpu_custom_call.1} parent=11 // pred_fallthru
          _
        // Predicated region
        $region45: #{tpu_custom_call.1} parent=11 // pred_check
          %p397 = pneg %p279
        $region46: #{tpu_custom_call.1} parent=11 // pred_check_branch
          %399 = sbr.rel (%p397) target = $region48
        $region47: #{tpu_custom_call.1} parent=11 // pred_region
          _
        $region48: #{tpu_custom_call.1} parent=11 // pred_fallthru
          _
        // Predicated region
        $region49: #{tpu_custom_call.1} parent=11 // pred_check
          %p400 = pneg %p300
        $region50: #{tpu_custom_call.1} parent=11 // pred_check_branch
          %402 = sbr.rel (%p400) target = $region52
        $region51: #{tpu_custom_call.1} parent=11 // pred_region
          %404 = vsyncadd [#allocation6], 0
          %s405 = sshll.u32 %s11, 4
          %s406 = int_to_ptr.hbm [resolvable:$true] %s405
          %s407 = sshll.u32 [#allocation7], 4
          %s408 = int_to_ptr.vmem [resolvable:$true] %s407
          %413 = dma.hbm_to_vmem [thread:$0]  %s406, 32, %s408, [#allocation6], 16, 16, 1
        $region52: #{tpu_custom_call.1} parent=11 // pred_fallthru
          _
        // Predicated region
        $region53: #{tpu_custom_call.1} parent=11 // pred_check
          %p414 = pneg %p321
        $region54: #{tpu_custom_call.1} parent=11 // pred_check_branch
          %416 = sbr.rel (%p414) target = $region56
        $region55: #{tpu_custom_call.1} parent=11 // pred_region
          _
        $region56: #{tpu_custom_call.1} parent=11 // pred_fallthru
          _
      $region12: #{tpu_custom_call.1} parent=5 // pred_fallthru
        _
      %p417 = scmp.lt.s32.totalorder %s26, 8
      // Predicated region
      $region57: #{tpu_custom_call.1} parent=5 // pred_check
        %p418 = pneg %p417
      $region58: #{tpu_custom_call.1} parent=5 // pred_check_branch
        %420 = sbr.rel (%p418) target = $region60
      $region59: #{tpu_custom_call.1} parent=5 // pred_region
        // Predicated region
        $region61: #{tpu_custom_call.1} parent=59 // pred_check
          %p421 = pneg %p58
        $region62: #{tpu_custom_call.1} parent=59 // pred_check_branch
          %423 = sbr.rel (%p421) target = $region64
        $region63: #{tpu_custom_call.1} parent=59 // pred_region
          %s424 = sand.u32 %s48, 1
          %s425 = scalar_lea.sflag [#allocation3], %s424
          %s426 = sand.u32 %s48, 1
          %s427 = smul.addr %s426, 8
          %s428 = scalar_lea.vmem [#allocation2], %s427
          %430 = vsyncadd %s425, 0
          %s431 = smul.addr %s33, 8
          %s432 = scalar_lea.hbm %s0, %s431
          %s434 = sshll.u32 %s432, 4
          %s435 = int_to_ptr.hbm [resolvable:$true] %s434
          %s436 = sshll.u32 %s428, 4
          %s437 = int_to_ptr.vmem [resolvable:$true] %s436
          %439 = dma.hbm_to_vmem [thread:$0]  %s435, 128, %s437, %s425
        $region64: #{tpu_custom_call.1} parent=59 // pred_fallthru
          _
        // Predicated region
        $region65: #{tpu_custom_call.1} parent=59 // pred_check
          %p440 = pneg %p84
        $region66: #{tpu_custom_call.1} parent=59 // pred_check_branch
          %442 = sbr.rel (%p440) target = $region68
        $region67: #{tpu_custom_call.1} parent=59 // pred_region
          %p443 = scmp.lt.s32.totalorder %s33, 1
          %s444 = scalar_select %p443, %s33, 1
          %s445 = scalar_lea.vmem %s1, %s444
        $region68: #{tpu_custom_call.1} parent=59 // pred_fallthru
          _
      $region60: #{tpu_custom_call.1} parent=5 // pred_fallthru
        _
      %p446 = scmp.le.s32.totalorder 1, %s26
      %p447 = scmp.lt.s32.totalorder %s26, 9
      %p448 = pnand %p446, %p447
      %p449 = pneg %p448
      // Predicated region
      $region69: #{tpu_custom_call.1} parent=5 // pred_check
        _
      $region70: #{tpu_custom_call.1} parent=5 // pred_check_branch
        %451 = sbr.rel (%p448) target = $region72
      $region71: #{tpu_custom_call.1} parent=5 // pred_region
        %s452 = ssub.s32 %s26, 1
        %s453 = sand.u32 %s51, 1
        %s454 = scalar_lea.sflag [#allocation3], %s453
        %s455 = sand.u32 %s51, 1
        %s456 = smul.addr %s455, 8
        %s457 = scalar_lea.vmem [#allocation2], %s456
        // Predicated region
        $region73: #{tpu_custom_call.1} parent=71 // pred_check
          %p458 = pneg %p64
        $region74: #{tpu_custom_call.1} parent=71 // pred_check_branch
          %460 = sbr.rel (%p458) target = $region76
        $region75: #{tpu_custom_call.1} parent=71 // pred_region
          %462 = dma.done %s454, 128
        $region76: #{tpu_custom_call.1} parent=71 // pred_fallthru
          _
        // Predicated region
        $region77: #{tpu_custom_call.1} parent=71 // pred_check
          %p463 = pneg %p258
        $region78: #{tpu_custom_call.1} parent=71 // pred_check_branch
          %465 = sbr.rel (%p463) target = $region80
        $region79: #{tpu_custom_call.1} parent=71 // pred_region
          %467 = dma.done [#allocation6], 32
        $region80: #{tpu_custom_call.1} parent=71 // pred_fallthru
          _
        // Predicated region
        $region81: #{tpu_custom_call.1} parent=71 // pred_check
          %p468 = pneg %p300
        $region82: #{tpu_custom_call.1} parent=71 // pred_check_branch
          %470 = sbr.rel (%p468) target = $region84
        $region83: #{tpu_custom_call.1} parent=71 // pred_region
          %472 = dma.done [#allocation6], 32
        $region84: #{tpu_custom_call.1} parent=71 // pred_fallthru
          _
        %s473 = sand.u32 %s51, 1
        %s474 = scalar_lea.sflag [#allocation3], %s473
        %s475 = sand.u32 %s51, 1
        %s476 = smul.addr %s475, 8
        %s477 = scalar_lea.vmem [#allocation2], %s476
        %p478 = pneg %p64
        %p479 = pneg %p61
        %p480 = scmp.lt.s32.totalorder %s35, 1
        %s481 = scalar_select %p480, %s35, 1
        %s482 = scalar_lea.vmem %s1, %s481
        %p483 = pneg %p90
        %p484 = pneg %p87
        %p485 = pneg %p111
        %p486 = pneg %p108
        %p487 = pneg %p132
        %p488 = pneg %p129
        %p489 = pneg %p153
        %p490 = pneg %p150
        %p491 = pneg %p174
        %p492 = pneg %p171
        %p493 = pneg %p195
        %p494 = pneg %p192
        %p495 = pneg %p216
        %p496 = pneg %p213
        %p497 = pneg %p237
        %p498 = pneg %p234
        %p499 = pneg %p258
        %p500 = pneg %p255
        %p501 = pneg %p279
        %p502 = pneg %p276
        %p503 = pneg %p300
        %p504 = pneg %p297
        %p505 = pneg %p321
        %p506 = pneg %p318
        %p507 = pneg %p347
        %p508 = pneg %p344
        %s509 = sand.u32 %s334, 1
        %s510 = scalar_lea.sflag [#allocation4], %s509
        %s511 = sand.u32 %s334, 1
        %s512 = smul.addr %s511, 8
        %s513 = scalar_lea.vmem [#allocation8], %s512
        %p514 = scmp.lt.s32.totalorder %s35, 1
        %s515 = scalar_select %p514, %s35, 1
        %s516 = scalar_lea.vmem %s1, %s515
        %p518 = scmp.lt.s32.totalorder %s36, 0
        %s519 = ssub.s32 0, %s36
        %s520 = scalar_select %p518, %s519, %s36
        %s521 = sand.u32 %s520, 1
        %s522 = ssub.s32 0, %s521
        %s523 = scalar_select %p518, %s522, %s521
        %p524 = scmp.ne.s32.totalorder %s523, 0
        %p525 = scmp.lt.s32.totalorder %s523, 0
        %p526 = pnand %p525, %p524
        %p527 = pneg %p526
        %s528 = sadd.s32 %s523, 2
        %s529 = scalar_select %p527, %s528, %s523
        %p530 = scmp.eq.s32.totalorder %s36, 0
        // Predicated region
        $region85: #{tpu_custom_call.1} parent=71 // pred_check
          %p531 = pneg %p530
        $region86: #{tpu_custom_call.1} parent=71 // pred_check_branch
          %533 = sbr.rel (%p531) target = $region88
        $region87: #{tpu_custom_call.1} parent=71 // pred_region
          %v534 = vld [vmem:[%s457] sm:$0xff]
          %vm535 = vcmask 261120
          %536 = vst.msk [vmem:[%s513] sm:$0xff] %vm535, %v534
        $region88: #{tpu_custom_call.1} parent=71 // pred_fallthru
          _
        %v537 = vld [vmem:[%s513] sm:$0xff]
        %vm538 = vcmask 261120
        %v539 = vsel %vm538, %v537, 0.0
        %540 = vadd.xlane.f32.xlu0 %v539
        %v541 = vpop.xlane.xlu0 %540
        %v542 = vrcp.pop 32.0
        %v543 = vmul.f32 32.0, %v542
        %v544 = vsub.f32 1.0, %v543
        %v545 = vmul.f32 %v542, %v544
        %v546 = vadd.f32 %v542, %v545
        %vm547 = vweird.f32 %v542
        %v548 = vsel %vm547, %v542, %v546
        %v549 = vmul.f32 %v541, %v548
        %v550 = vsub.f32 %v537, %v549
        %v551 = vmul.f32 %v550, %v550
        %v552 = vsel %vm538, %v551, 0.0
        %553 = vadd.xlane.f32.xlu0 %v552
        %v554 = vpop.xlane.xlu0 %553
        %v555 = vmul.f32 %v554, %v548
        %v556 = vadd.f32 %v555, 1e-05
        %v557 = vrsqrt.pop %v556
        %v558 = vmul.f32 %v557, %v556
        %v559 = vmul.f32 %v558, %v557
        %v560 = vmul.f32 0.5, %v559
        %v561 = vsub.f32 1.5, %v560
        %v562 = vmul.f32 %v557, %v561
        %vm563 = vweird.f32 %v556
        %vm564 = vweird.f32 %v557
        %vm565 = vmor %vm563, %vm564
        %v566 = vsel %vm565, %v557, %v562
        %v567 = vmul.f32 %v550, %v566
        %s568 = scalar_lea.vmem %s2, %s529
        %v569 = vld [vmem:[%s568] sm:$0x1]
        %v571 = vperm.slane %v569, 0
        %v573 = vmul.f32 %v567, %v571
        %s574 = scalar_lea.vmem %s3, %s529
        %v575 = vld [vmem:[%s574] sm:$0x1]
        %v577 = vperm.slane %v575, 0
        %v579 = vadd.f32 %v573, %v577
        %v580 = vpack.c.bf16 %v579, %v579
        %s581 = smul.u32 %s529, 4
        %s582 = smul.addr %s581, 4
        %s583 = scalar_lea.vmem %s4, %s582
        %v584 = vld [vmem:[%s583] sm:$0xf]
        %v585 = vld [vmem:[%s583 + $0x4] sm:$0xf]
        %v586 = vld [vmem:[%s583 + $0x8] sm:$0xf]
        %v587 = vld [vmem:[%s583 + $0xc] sm:$0xf]
        %s588 = scalar_lea.vmem %s5, %s529
        %v589 = vld [vmem:[%s588] sm:$0x1]
        %v591 = vperm.slane %v589, 0
        %v597 = vunpack.c.l.b16 %v584
        %v598 = vunpack.c.l.b16 %v585
        %v599 = vunpack.c.l.b16 %v586
        %v600 = vunpack.c.l.b16 %v587
        %v601 = vpack.c.b16 %v598, %v597
        %v602 = vpack.c.b16 %v600, %v599
        %v606 = vsel %vm538, %v580, 0
        %608 = vmatpush.bf16.msra.mxu0 0
        %609 = vmatpush.bf16.msra.mxu0 0
        %610 = vmatpush.bf16.msra.mxu0 0
        %611 = vmatpush.bf16.msra.mxu0 0
        %612 = vmatpush.bf16.msra.mxu0 0
        %613 = vmatpush.bf16.msra.mxu0 0
        %614 = vmatpush.bf16.msra.mxu0 %v602
        %615 = vmatpush.bf16.msra.mxu0 %v601
        %616 = vmatmul.bf16.gmra.mxu0 %v606
        %v617 = vpop.f32.mrf.mxu0
        %v618 = vadd.f32 %v591, %v617
        %v619 = vpop.f32.mrf.mxu0
        %620 = vdwg.mxu0
        %v621 = vpack.c.bf16 %v618, %v618
        %v622 = vld [vmem:[%s516] sm:$0x1]
        %v624 = vunpack.c.l.b16 %v621
        %v625 = vpack.c.b16 %v624, %v624
        %626 = vrot.lane.b32.xlu0 %v625, 96
        %v627 = vpop.permute.xlu0 %626
        %vm628 = vcmask 64512
        %v630 = vsel %vm628, %v621, 0
        %v633 = vsel %vm628, %v627, 0
        %635 = vmatpush.bf16.xpose.msra.mxu0 0
        %636 = vmatpush.bf16.xpose.msra.mxu0 0
        %637 = vmatpush.bf16.xpose.msra.mxu0 0
        %638 = vmatpush.bf16.xpose.msra.mxu0 0
        %639 = vmatpush.bf16.xpose.msra.mxu0 0
        %640 = vmatpush.bf16.xpose.msra.mxu0 0
        %641 = vmatpush.bf16.xpose.msra.mxu0 0
        %642 = vmatpush.bf16.xpose.msra.mxu0 %v633
        %643 = vmatmul.bf16.gmra.mxu0 %v630
        %v644 = vpop.f32.mrf.mxu0
        %v645 = vadd.f32 0.0, %v644
        %v646 = vpop.f32.mrf.mxu0
        %647 = vdwg.mxu0
        %v648 = vmul.f32 %v645, 0.35355338
        %v650 = vperm.slane %v622, 0
        %v652 = vadd.f32 %v648, %v650
        %v653 = vsel %vm628, %v652, -inf
        %654 = vmax.xlane.f32.xlu0 %v653
        %v655 = vpop.xlane.xlu0 %654
        %v656 = vsub.f32 %v652, %v655
        %v657 = vmul.f32 %v656, 1.442695
        %v658 = vpow.pop %v657
        %v659 = vsel %vm628, %v658, 0.0
        %660 = vadd.xlane.f32.xlu0 %v659
        %v661 = vpop.xlane.xlu0 %660
        %v662 = vrcp.pop %v661
        %v663 = vmul.f32 %v661, %v662
        %v664 = vsub.f32 1.0, %v663
        %v665 = vmul.f32 %v662, %v664
        %v666 = vadd.f32 %v662, %v665
        %vm667 = vweird.f32 %v661
        %vm668 = vweird.f32 %v662
        %vm669 = vmor %vm667, %vm668
        %v670 = vsel %vm669, %v662, %v666
        %v671 = vand.u32 2147483647, %v661
        %vm672 = vcmp.eq.f32.partialorder %v671, 8.507059e+37
        %v673 = vand.u32 %v661, 2147483648
        %v674 = vor.u32 1.1754944e-38, %v673
        %v675 = vsel %vm672, %v674, %v670
        %v676 = vmul.f32 %v658, %v675
        %v677 = vpack.c.bf16 %v676, %v676
        %678 = vrot.lane.b32.xlu0 %v625, 64
        %v679 = vpop.permute.xlu0 %678
        %v681 = vsel %vm628, %v677, 0
        %vm683 = vcmask 1043456
        %v685 = vsel %vm683, %v679, 0
        %687 = vmatpush.bf16.msra.mxu0 0
        %688 = vmatpush.bf16.msra.mxu0 0
        %689 = vmatpush.bf16.msra.mxu0 0
        %690 = vmatpush.bf16.msra.mxu0 0
        %691 = vmatpush.bf16.msra.mxu0 0
        %692 = vmatpush.bf16.msra.mxu0 0
        %693 = vmatpush.bf16.msra.mxu0 0
        %694 = vmatpush.bf16.msra.mxu0 %v685
        %695 = vmatmul.bf16.gmra.mxu0 %v681
        %v696 = vpop.f32.mrf.mxu0
        %v697 = vadd.f32 0.0, %v696
        %v698 = vpop.f32.mrf.mxu0
        %699 = vdwg.mxu0
        %700 = vrot.lane.b32.xlu0 %v625, 120
        %v701 = vpop.permute.xlu0 %700
        %702 = vrot.lane.b32.xlu0 %v625, 88
        %v703 = vpop.permute.xlu0 %702
        %v705 = vsel %vm628, %v701, 0
        %v708 = vsel %vm628, %v703, 0
        %710 = vmatpush.bf16.xpose.msra.mxu0 0
        %711 = vmatpush.bf16.xpose.msra.mxu0 0
        %712 = vmatpush.bf16.xpose.msra.mxu0 0
        %713 = vmatpush.bf16.xpose.msra.mxu0 0
        %714 = vmatpush.bf16.xpose.msra.mxu0 0
        %715 = vmatpush.bf16.xpose.msra.mxu0 0
        %716 = vmatpush.bf16.xpose.msra.mxu0 0
        %717 = vmatpush.bf16.xpose.msra.mxu0 %v708
        %718 = vmatmul.bf16.gmra.mxu0 %v705
        %v719 = vpop.f32.mrf.mxu0
        %v720 = vadd.f32 0.0, %v719
        %v721 = vpop.f32.mrf.mxu0
        %722 = vdwg.mxu0
        %v723 = vmul.f32 %v720, 0.35355338
        %v724 = vadd.f32 %v723, %v650
        %v725 = vsel %vm628, %v724, -inf
        %726 = vmax.xlane.f32.xlu0 %v725
        %v727 = vpop.xlane.xlu0 %726
        %v728 = vsub.f32 %v724, %v727
        %v729 = vmul.f32 %v728, 1.442695
        %v730 = vpow.pop %v729
        %v731 = vsel %vm628, %v730, 0.0
        %732 = vadd.xlane.f32.xlu0 %v731
        %v733 = vpop.xlane.xlu0 %732
        %v734 = vrcp.pop %v733
        %v735 = vmul.f32 %v733, %v734
        %v736 = vsub.f32 1.0, %v735
        %v737 = vmul.f32 %v734, %v736
        %v738 = vadd.f32 %v734, %v737
        %vm739 = vweird.f32 %v733
        %vm740 = vweird.f32 %v734
        %vm741 = vmor %vm739, %vm740
        %v742 = vsel %vm741, %v734, %v738
        %v743 = vand.u32 2147483647, %v733
        %vm744 = vcmp.eq.f32.partialorder %v743, 8.507059e+37
        %v745 = vand.u32 %v733, 2147483648
        %v746 = vor.u32 1.1754944e-38, %v745
        %v747 = vsel %vm744, %v746, %v742
        %v748 = vmul.f32 %v730, %v747
        %v749 = vpack.c.bf16 %v748, %v748
        %750 = vrot.lane.b32.xlu0 %v625, 56
        %v751 = vpop.permute.xlu0 %750
        %v753 = vsel %vm628, %v749, 0
        %v756 = vsel %vm683, %v751, 0
        %758 = vmatpush.bf16.msra.mxu0 0
        %759 = vmatpush.bf16.msra.mxu0 0
        %760 = vmatpush.bf16.msra.mxu0 0
        %761 = vmatpush.bf16.msra.mxu0 0
        %762 = vmatpush.bf16.msra.mxu0 0
        %763 = vmatpush.bf16.msra.mxu0 0
        %764 = vmatpush.bf16.msra.mxu0 0
        %765 = vmatpush.bf16.msra.mxu0 %v756
        %766 = vmatmul.bf16.gmra.mxu0 %v753
        %v767 = vpop.f32.mrf.mxu0
        %v768 = vadd.f32 0.0, %v767
        %v769 = vpop.f32.mrf.mxu0
        %770 = vdwg.mxu0
        %771 = vrot.lane.b32.xlu0 %v625, 112
        %v772 = vpop.permute.xlu0 %771
        %773 = vrot.lane.b32.xlu0 %v625, 80
        %v774 = vpop.permute.xlu0 %773
        %v776 = vsel %vm628, %v772, 0
        %v779 = vsel %vm628, %v774, 0
        %781 = vmatpush.bf16.xpose.msra.mxu0 0
        %782 = vmatpush.bf16.xpose.msra.mxu0 0
        %783 = vmatpush.bf16.xpose.msra.mxu0 0
        %784 = vmatpush.bf16.xpose.msra.mxu0 0
        %785 = vmatpush.bf16.xpose.msra.mxu0 0
        %786 = vmatpush.bf16.xpose.msra.mxu0 0
        %787 = vmatpush.bf16.xpose.msra.mxu0 0
        %788 = vmatpush.bf16.xpose.msra.mxu0 %v779
        %789 = vmatmul.bf16.gmra.mxu0 %v776
        %v790 = vpop.f32.mrf.mxu0
        %v791 = vadd.f32 0.0, %v790
        %v792 = vpop.f32.mrf.mxu0
        %793 = vdwg.mxu0
        %v794 = vmul.f32 %v791, 0.35355338
        %v795 = vadd.f32 %v794, %v650
        %v796 = vsel %vm628, %v795, -inf
        %797 = vmax.xlane.f32.xlu0 %v796
        %v798 = vpop.xlane.xlu0 %797
        %v799 = vsub.f32 %v795, %v798
        %v800 = vmul.f32 %v799, 1.442695
        %v801 = vpow.pop %v800
        %v802 = vsel %vm628, %v801, 0.0
        %803 = vadd.xlane.f32.xlu0 %v802
        %v804 = vpop.xlane.xlu0 %803
        %v805 = vrcp.pop %v804
        %v806 = vmul.f32 %v804, %v805
        %v807 = vsub.f32 1.0, %v806
        %v808 = vmul.f32 %v805, %v807
        %v809 = vadd.f32 %v805, %v808
        %vm810 = vweird.f32 %v804
        %vm811 = vweird.f32 %v805
        %vm812 = vmor %vm810, %vm811
        %v813 = vsel %vm812, %v805, %v809
        %v814 = vand.u32 2147483647, %v804
        %vm815 = vcmp.eq.f32.partialorder %v814, 8.507059e+37
        %v816 = vand.u32 %v804, 2147483648
        %v817 = vor.u32 1.1754944e-38, %v816
        %v818 = vsel %vm815, %v817, %v813
        %v819 = vmul.f32 %v801, %v818
        %v820 = vpack.c.bf16 %v819, %v819
        %821 = vrot.lane.b32.xlu0 %v625, 48
        %v822 = vpop.permute.xlu0 %821
        %v824 = vsel %vm628, %v820, 0
        %v827 = vsel %vm683, %v822, 0
        %829 = vmatpush.bf16.msra.mxu0 0
        %830 = vmatpush.bf16.msra.mxu0 0
        %831 = vmatpush.bf16.msra.mxu0 0
        %832 = vmatpush.bf16.msra.mxu0 0
        %833 = vmatpush.bf16.msra.mxu0 0
        %834 = vmatpush.bf16.msra.mxu0 0
        %835 = vmatpush.bf16.msra.mxu0 0
        %836 = vmatpush.bf16.msra.mxu0 %v827
        %837 = vmatmul.bf16.gmra.mxu0 %v824
        %v838 = vpop.f32.mrf.mxu0
        %v839 = vadd.f32 0.0, %v838
        %v840 = vpop.f32.mrf.mxu0
        %841 = vdwg.mxu0
        %842 = vrot.lane.b32.xlu0 %v625, 104
        %v843 = vpop.permute.xlu0 %842
        %844 = vrot.lane.b32.xlu0 %v625, 72
        %v845 = vpop.permute.xlu0 %844
        %v847 = vsel %vm628, %v843, 0
        %v850 = vsel %vm628, %v845, 0
        %852 = vmatpush.bf16.xpose.msra.mxu0 0
        %853 = vmatpush.bf16.xpose.msra.mxu0 0
        %854 = vmatpush.bf16.xpose.msra.mxu0 0
        %855 = vmatpush.bf16.xpose.msra.mxu0 0
        %856 = vmatpush.bf16.xpose.msra.mxu0 0
        %857 = vmatpush.bf16.xpose.msra.mxu0 0
        %858 = vmatpush.bf16.xpose.msra.mxu0 0
        %859 = vmatpush.bf16.xpose.msra.mxu0 %v850
        %860 = vmatmul.bf16.gmra.mxu0 %v847
        %v861 = vpop.f32.mrf.mxu0
        %v862 = vadd.f32 0.0, %v861
        %v863 = vpop.f32.mrf.mxu0
        %864 = vdwg.mxu0
        %v865 = vmul.f32 %v862, 0.35355338
        %v866 = vadd.f32 %v865, %v650
        %v867 = vsel %vm628, %v866, -inf
        %868 = vmax.xlane.f32.xlu0 %v867
        %v869 = vpop.xlane.xlu0 %868
        %v870 = vsub.f32 %v866, %v869
        %v871 = vmul.f32 %v870, 1.442695
        %v872 = vpow.pop %v871
        %v873 = vsel %vm628, %v872, 0.0
        %874 = vadd.xlane.f32.xlu0 %v873
        %v875 = vpop.xlane.xlu0 %874
        %v876 = vrcp.pop %v875
        %v877 = vmul.f32 %v875, %v876
        %v878 = vsub.f32 1.0, %v877
        %v879 = vmul.f32 %v876, %v878
        %v880 = vadd.f32 %v876, %v879
        %vm881 = vweird.f32 %v875
        %vm882 = vweird.f32 %v876
        %vm883 = vmor %vm881, %vm882
        %v884 = vsel %vm883, %v876, %v880
        %v885 = vand.u32 2147483647, %v875
        %vm886 = vcmp.eq.f32.partialorder %v885, 8.507059e+37
        %v887 = vand.u32 %v875, 2147483648
        %v888 = vor.u32 1.1754944e-38, %v887
        %v889 = vsel %vm886, %v888, %v884
        %v890 = vmul.f32 %v872, %v889
        %v891 = vpack.c.bf16 %v890, %v890
        %892 = vrot.lane.b32.xlu0 %v625, 40
        %v893 = vpop.permute.xlu0 %892
        %v895 = vsel %vm628, %v891, 0
        %v898 = vsel %vm683, %v893, 0
        %900 = vmatpush.bf16.msra.mxu0 0
        %901 = vmatpush.bf16.msra.mxu0 0
        %902 = vmatpush.bf16.msra.mxu0 0
        %903 = vmatpush.bf16.msra.mxu0 0
        %904 = vmatpush.bf16.msra.mxu0 0
        %905 = vmatpush.bf16.msra.mxu0 0
        %906 = vmatpush.bf16.msra.mxu0 0
        %907 = vmatpush.bf16.msra.mxu0 %v898
        %908 = vmatmul.bf16.gmra.mxu0 %v895
        %v909 = vpop.f32.mrf.mxu0
        %v910 = vadd.f32 0.0, %v909
        %v911 = vpop.f32.mrf.mxu0
        %912 = vdwg.mxu0
        %914 = vrot.lane.b32.xlu0 %v768, 8
        %v915 = vpop.permute.xlu0 %914
        %918 = vrot.lane.b32.xlu0 %v839, 16
        %v919 = vpop.permute.xlu0 %918
        %922 = vrot.lane.b32.xlu0 %v910, 24
        %v923 = vpop.permute.xlu0 %922
        %v925 = vsel %vm628, %v697, %v915
        %vm926 = vcmask 130048
        %v927 = vsel %vm926, %v925, %v919
        %vm928 = vcmask 195584
        %v929 = vsel %vm928, %v927, %v923
        %v930 = vpack.c.bf16 %v929, %v929
        %s931 = smul.addr %s581, 4
        %s932 = scalar_lea.vmem %s6, %s931
        %v933 = vld [vmem:[%s932] sm:$0xf]
        %v934 = vld [vmem:[%s932 + $0x4] sm:$0xf]
        %v935 = vld [vmem:[%s932 + $0x8] sm:$0xf]
        %v936 = vld [vmem:[%s932 + $0xc] sm:$0xf]
        %s937 = scalar_lea.vmem %s7, %s529
        %v938 = vld [vmem:[%s937] sm:$0x1]
        %v940 = vperm.slane %v938, 0
        %v946 = vunpack.c.l.b16 %v933
        %v947 = vunpack.c.l.b16 %v934
        %v948 = vunpack.c.l.b16 %v935
        %v949 = vunpack.c.l.b16 %v936
        %v950 = vpack.c.b16 %v947, %v946
        %v951 = vpack.c.b16 %v949, %v948
        %v955 = vsel %vm538, %v930, 0
        %957 = vmatpush.bf16.msra.mxu0 0
        %958 = vmatpush.bf16.msra.mxu0 0
        %959 = vmatpush.bf16.msra.mxu0 0
        %960 = vmatpush.bf16.msra.mxu0 0
        %961 = vmatpush.bf16.msra.mxu0 0
        %962 = vmatpush.bf16.msra.mxu0 0
        %963 = vmatpush.bf16.msra.mxu0 %v951
        %964 = vmatpush.bf16.msra.mxu0 %v950
        %965 = vmatmul.bf16.gmra.mxu0 %v955
        %v966 = vpop.f32.mrf.mxu0
        %v967 = vadd.f32 %v940, %v966
        %v968 = vpop.f32.mrf.mxu0
        %969 = vdwg.mxu0
        %s970 = scalar_lea.vmem %s12, %s529
        %v971 = vld [vmem:[%s970] sm:$0x1]
        %v973 = vperm.slane %v971, 0
        %974 = vset.pattern.permute.xlu0 0
        %975 = vperm.xlu0 %974, %v973
        %v976 = vpop.permute.xlu0 %975
        %v978 = vmul.f32 %v976, %v967
        %v979 = vadd.f32 %v579, %v978
        %v980 = vpack.c.bf16 %v979, %v979
        %s981 = smul.addr %s581, 4
        %s982 = scalar_lea.vmem %s8, %s981
        %v983 = vld [vmem:[%s982] sm:$0xf]
        %v984 = vld [vmem:[%s982 + $0x4] sm:$0xf]
        %v985 = vld [vmem:[%s982 + $0x8] sm:$0xf]
        %v986 = vld [vmem:[%s982 + $0xc] sm:$0xf]
        %s987 = scalar_lea.vmem [#allocation5], %s529
        %v988 = vld [vmem:[%s987] sm:$0x1]
        %v990 = vperm.slane %v988, 0
        %v996 = vunpack.c.l.b16 %v983
        %v997 = vunpack.c.l.b16 %v984
        %v998 = vunpack.c.l.b16 %v985
        %v999 = vunpack.c.l.b16 %v986
        %v1000 = vpack.c.b16 %v997, %v996
        %v1001 = vpack.c.b16 %v999, %v998
        %v1005 = vsel %vm538, %v980, 0
        %1007 = vmatpush.bf16.msra.mxu0 0
        %1008 = vmatpush.bf16.msra.mxu0 0
        %1009 = vmatpush.bf16.msra.mxu0 0
        %1010 = vmatpush.bf16.msra.mxu0 0
        %1011 = vmatpush.bf16.msra.mxu0 0
        %1012 = vmatpush.bf16.msra.mxu0 0
        %1013 = vmatpush.bf16.msra.mxu0 %v1001
        %1014 = vmatpush.bf16.msra.mxu0 %v1000
        %1015 = vmatmul.bf16.gmra.mxu0 %v1005
        %v1016 = vpop.f32.mrf.mxu0
        %v1017 = vadd.f32 %v990, %v1016
        %v1018 = vpop.f32.mrf.mxu0
        %1019 = vdwg.mxu0
        %v1020 = vmax.f32 %v1017, 0.0
        %v1021 = vpack.c.bf16 %v1020, %v1020
        %s1022 = smul.u32 %s529, 8
        %s1023 = smul.addr %s1022, 4
        %s1024 = scalar_lea.vmem %s10, %s1023
        %v1025 = vld [vmem:[%s1024] sm:$0xf]
        %v1026 = vld [vmem:[%s1024 + $0x4] sm:$0xf]
        %v1027 = vld [vmem:[%s1024 + $0x8] sm:$0xf]
        %v1028 = vld [vmem:[%s1024 + $0xc] sm:$0xf]
        %v1029 = vld [vmem:[%s1024 + $0x10] sm:$0xf]
        %v1030 = vld [vmem:[%s1024 + $0x14] sm:$0xf]
        %v1031 = vld [vmem:[%s1024 + $0x18] sm:$0xf]
        %v1032 = vld [vmem:[%s1024 + $0x1c] sm:$0xf]
        %s1033 = scalar_lea.vmem [#allocation7], %s529
        %v1034 = vld [vmem:[%s1033] sm:$0x1]
        %v1036 = vperm.slane %v1034, 0
        %v1046 = vunpack.c.l.b16 %v1025
        %v1047 = vunpack.c.l.b16 %v1026
        %v1048 = vunpack.c.l.b16 %v1027
        %v1049 = vunpack.c.l.b16 %v1028
        %v1050 = vunpack.c.l.b16 %v1029
        %v1051 = vunpack.c.l.b16 %v1030
        %v1052 = vunpack.c.l.b16 %v1031
        %v1053 = vunpack.c.l.b16 %v1032
        %v1054 = vpack.c.b16 %v1047, %v1046
        %v1055 = vpack.c.b16 %v1049, %v1048
        %v1056 = vpack.c.b16 %v1051, %v1050
        %v1057 = vpack.c.b16 %v1053, %v1052
        %vm1062 = vcmask 523264
        %v1064 = vsel %vm1062, %v1021, 0
        %1066 = vmatpush.bf16.msra.mxu0 0
        %1067 = vmatpush.bf16.msra.mxu0 0
        %1068 = vmatpush.bf16.msra.mxu0 0
        %1069 = vmatpush.bf16.msra.mxu0 0
        %1070 = vmatpush.bf16.msra.mxu0 %v1057
        %1071 = vmatpush.bf16.msra.mxu0 %v1056
        %1072 = vmatpush.bf16.msra.mxu0 %v1055
        %1073 = vmatpush.bf16.msra.mxu0 %v1054
        %1074 = vmatmul.bf16.gmra.mxu0 %v1064
        %v1075 = vpop.f32.mrf.mxu0
        %v1076 = vadd.f32 %v1036, %v1075
        %v1077 = vpop.f32.mrf.mxu0
        %1078 = vdwg.mxu0
        %v1079 = vmul.f32 %v976, %v1076
        %v1080 = vadd.f32 %v979, %v1079
        %1081 = vst.msk [vmem:[%s513] sm:$0xff] %vm538, %v1080
        %s1082 = sand.u32 %s334, 1
        %s1083 = scalar_lea.sflag [#allocation4], %s1082
        %s1084 = sand.u32 %s334, 1
        %s1085 = smul.addr %s1084, 8
        %s1086 = scalar_lea.vmem [#allocation8], %s1085
        // Predicated region
        $region89: #{tpu_custom_call.1} parent=71 // pred_check
          %p1087 = pneg %p344
        $region90: #{tpu_custom_call.1} parent=71 // pred_check_branch
          %1089 = sbr.rel (%p1087) target = $region92
        $region91: #{tpu_custom_call.1} parent=71 // pred_region
          %1091 = vsyncadd %s1083, 0
          %s1092 = smul.addr %s35, 8
          %s1093 = scalar_lea.hbm %s13, %s1092
          %s1095 = sshll.u32 %s1086, 4
          %s1096 = int_to_ptr.vmem [resolvable:$true] %s1095
          %s1097 = sshll.u32 %s1093, 4
          %s1098 = int_to_ptr.hbm [resolvable:$true] %s1097
          %1100 = dma.vmem_to_hbm [thread:$0]  %s1096, 128, %s1098, %s1083
        $region92: #{tpu_custom_call.1} parent=71 // pred_fallthru
          _
      $region72: #{tpu_custom_call.1} parent=5 // pred_fallthru
        _
      %p1101 = scmp.le.s32.totalorder 2, %s26
      // Predicated region
      $region93: #{tpu_custom_call.1} parent=5 // pred_check
        %p1102 = pneg %p1101
      $region94: #{tpu_custom_call.1} parent=5 // pred_check_branch
        %1104 = sbr.rel (%p1102) target = $region96
      $region95: #{tpu_custom_call.1} parent=5 // pred_region
        %s1105 = ssub.s32 %s26, 2
        // Predicated region
        $region97: #{tpu_custom_call.1} parent=95 // pred_check
          %p1106 = pneg %p350
        $region98: #{tpu_custom_call.1} parent=95 // pred_check_branch
          %1108 = sbr.rel (%p1106) target = $region100
        $region99: #{tpu_custom_call.1} parent=95 // pred_region
          %s1109 = sand.u32 %s335, 1
          %s1110 = scalar_lea.sflag [#allocation4], %s1109
          %s1111 = sand.u32 %s335, 1
          %s1112 = smul.addr %s1111, 8
          %s1113 = scalar_lea.vmem [#allocation8], %s1112
          %1115 = dma.done %s1110, 128
        $region100: #{tpu_custom_call.1} parent=95 // pred_fallthru
          _
      $region96: #{tpu_custom_call.1} parent=5 // pred_fallthru
        _
    $region6: #{tpu_custom_call.1} parent=1 // loop_footer
      %s30 = sadd.s32 1, %s26
    $region7: #{tpu_custom_call.1} parent=1 // loop_footer_branch
      %25 = sbr.rel target = $region3
    $region8: #{tpu_custom_call.1} parent=1 // loop_exit
      _
    %1116 = vsyncpa [#allocation3], 1
    %s1117 = scalar_lea.sflag [#allocation3], 1
    %1118 = vsyncpa %s1117, 1
    %1119 = vsyncpa [#allocation6], 1
    %1120 = vsyncpa [#allocation4], 1
    %s1121 = scalar_lea.sflag [#allocation4], 1
    %1122 = vsyncpa %s1121, 1

</llo_original>
